<compile_context>
chip_gen: v7x
topology: tpu7x:2x2x1
jax: 0.10.0
libtpu: 0.0.40
codegen_flags: <defaults>
</compile_context>

<pallas_src>
import functools

import jax
import jax.numpy as jnp
import numpy as np
from jax import lax
from jax.experimental import pallas as pl
from jax.experimental.pallas import tpu as pltpu

EPS = 1e-5                 # InstanceNorm2d default eps
NEG_SLOPE = 0.01           # LeakyReLU default negative_slope
MXU_DTYPE = jnp.bfloat16   # matmul operand / inter-kernel dtype (accumulation stays f32)
VMEM_LIMIT = 48 * 1024 * 1024   # <= v7x physical VMEM (64 MiB), generous on v5e/v6e


# ----------------------------- Pallas kernels -------------------------------

def _decoder_block_kernel(p_ref, w_ref, g_ref, b_ref, uxt_ref, o_ref, z_ref, *,
                          cout, h, w, row_terms):
    """Fused ConvTranspose2d(3,2,1,1) + InstanceNorm + LeakyReLU + bilinear x2 (one sample).

    p_ref   : (1, 4Cin, H*W)   bf16  2x2-tap phase patches, rows tap-major (tap*Cin + ci)
    w_ref   : (4Cout, 4Cin)    bf16  merged phase weights, rows = px*2C + py*C + c
    g_ref/b_ref : (Cout, 1)    f32   InstanceNorm affine params
    uxt_ref : (2, W, 4W)       bf16  phase-split width-interp matrices (UxT_px)
    o_ref   : (1, 4H, Cout, 4W) bf16 bilinear output, row-major spatial layout
    z_ref   : (4Cout, H*W)     bf16  VMEM scratch (normalized + activated conv output)
    row_terms: python list; row_terms[i] = [(weight, a), ...] height-interp taps (a = 2m+py)
    """
    hw = h * w
    # ---- ConvTranspose2d: all four output phases in ONE MXU matmul ----------
    y = jnp.dot(w_ref[...], p_ref[0], preferred_element_type=jnp.float32)   # (4C, HW) f32

    # ---- InstanceNorm2d stats: per channel over all 4 phases x HW, one pass --
    s1 = jnp.sum(y, axis=1, keepdims=True)                                   # (4C, 1)
    s2 = jnp.sum(y * y, axis=1, keepdims=True)
    s1c = s1[0:cout] + s1[cout:2 * cout] + s1[2 * cout:3 * cout] + s1[3 * cout:4 * cout]
    s2c = s2[0:cout] + s2[cout:2 * cout] + s2[2 * cout:3 * cout] + s2[3 * cout:4 * cout]
    inv_n = 1.0 / (4.0 * hw)
    mean = s1c * inv_n                                                       # (C, 1)
    var = jnp.maximum(s2c * inv_n - mean * mean, 0.0)
    scale = lax.rsqrt(var + EPS) * g_ref[...]                                # (C, 1)
    shift = b_ref[...] - mean * scale
    scale4 = jnp.concatenate([scale, scale, scale, scale], axis=0)           # (4C, 1)
    shift4 = jnp.concatenate([shift, shift, shift, shift], axis=0)
    z = y * scale4 + shift4
    z = jnp.where(z >= 0, z, NEG_SLOPE * z)                                  # LeakyReLU
    z_ref[...] = z.astype(z_ref.dtype)                                       # bf16 staging

    # ---- bilinear x2 (align_corners=True), width pass: phase-split matmuls ---
    ux0 = uxt_ref[0]                                                         # (W, 4W) px=0
    ux1 = uxt_ref[1]                                                         # (W, 4W) px=1
    v = []                                                                   # per input row m
    for m in range(h):
        zm = z_ref[:, pl.ds(m * w, w)]                                       # (4C, W) bf16
        if w == 1:  # degenerate 1x1 block: broadcast outer product instead of a K=1 matmul
            zf = zm.astype(jnp.float32)
            v0 = zf[0:2 * cout] * ux0.astype(jnp.float32)
            v1 = zf[2 * cout:4 * cout] * ux1.astype(jnp.float32)
        else:
            v0 = jnp.dot(zm[0:2 * cout], ux0, preferred_element_type=jnp.float32)
            v1 = jnp.dot(zm[2 * cout:4 * cout], ux1, preferred_element_type=jnp.float32)
        v.append(v0 + v1)                                                    # (2C, 4W), rows py*C+c

    # ---- height pass: <=2 host-precomputed taps per output row, full-tile stores
    for i, terms in enumerate(row_terms):
        acc = None
        for (wgt, a) in terms:
            m, py = a // 2, a % 2
            slab = v[m][py * cout:(py + 1) * cout]                           # (C, 4W) f32
            contrib = slab * wgt
            acc = contrib if acc is None else acc + contrib
        o_ref[0, i] = acc.astype(o_ref.dtype)                                # (Cout, 4W) store


def _conv_in_tanh_kernel(p_ref, w_ref, g_ref, b_ref, o_ref):
    """Fused Conv2d(3x3, pad 1) + InstanceNorm + Tanh (one sample).

    p_ref: (1, 9Cin, HW) bf16 im2col patches   w_ref: (3, 9Cin) bf16
    g_ref/b_ref: (3, 1) f32    o_ref: (1, 3, HW) f32 (HW in lanes -> lane-dense stores)
    """
    y = jnp.dot(w_ref[...], p_ref[0], preferred_element_type=jnp.float32)    # (3, HW)
    inv_n = 1.0 / y.shape[1]
    s1 = jnp.sum(y, axis=1, keepdims=True)
    s2 = jnp.sum(y * y, axis=1, keepdims=True)
    mean = s1 * inv_n
    var = jnp.maximum(s2 * inv_n - mean * mean, 0.0)
    z = (y - mean) * (lax.rsqrt(var + EPS) * g_ref[...]) + b_ref[...]
    o_ref[0] = jnp.tanh(z).astype(o_ref.dtype)


# ------------------------------ pallas_call wrappers -------------------------

def _compiler_params():
    return pltpu.CompilerParams(dimension_semantics=("parallel",),
                                vmem_limit_bytes=VMEM_LIMIT)


def _decoder_block(x, wm, gamma, beta):
    """One decoder block.  x (N, Cin, H, W) -> (N, 4H, Cout, 4W) bf16 (row-major layout)."""
    N, Cin, H, W = x.shape
    Cout = wm.shape[0] // 4
    Ho, Wo = 4 * H, 4 * W

    patches = _phase_patches(x).astype(MXU_DTYPE)                  # (N, 4Cin, H*W)

    # Host-side (trace-time) constants: phase-split width interp matrices and sparse
    # height-interp taps for the (2H, 2W) -> (4H, 4W) bilinear x2, align_corners=True.
    ux = _interp_matrix(2 * W, Wo)                                 # (4W, 2W) numpy
    uxt = jnp.asarray(np.stack([ux[:, 0::2].T, ux[:, 1::2].T], axis=0), dtype=MXU_DTYPE)
    row_terms = _height_terms(H)

    kern = functools.partial(_decoder_block_kernel,
                             cout=Cout, h=H, w=W, row_terms=row_terms)
    return pl.pallas_call(
        kern,
        out_shape=jax.ShapeDtypeStruct((N, Ho, Cout, Wo), MXU_DTYPE),
        grid=(N,),
        in_specs=[
            pl.BlockSpec((1, 4 * Cin, H * W), lambda n: (n, 0, 0)),
            pl.BlockSpec((4 * Cout, 4 * Cin), lambda n: (0, 0)),
            pl.BlockSpec((Cout, 1), lambda n: (0, 0)),
            pl.BlockSpec((Cout, 1), lambda n: (0, 0)),
            pl.BlockSpec((2, W, Wo), lambda n: (0, 0, 0)),
        ],
        out_specs=pl.BlockSpec((1, Ho, Cout, Wo), lambda n: (n, 0, 0, 0)),
        scratch_shapes=[pltpu.VMEM((4 * Cout, H * W), MXU_DTYPE)],
        compiler_params=_compiler_params(),
    )(patches, wm, gamma, beta, uxt)


def _output_layer(patches, wmat, gamma, beta):
    """patches (N, 9Cin, HW) bf16 -> (N, 3, HW) f32."""
    N, K9, HW = patches.shape
    return pl.pallas_call(
        _conv_in_tanh_kernel,
        out_shape=jax.ShapeDtypeStruct((N, 3, HW), jnp.float32),
        grid=(N,),
        in_specs=[
            pl.BlockSpec((1, K9, HW), lambda n: (n, 0, 0)),
            pl.BlockSpec((3, K9), lambda n: (0, 0)),
            pl.BlockSpec((3, 1), lambda n: (0, 0)),
            pl.BlockSpec((3, 1), lambda n: (0, 0)),
        ],
        out_specs=pl.BlockSpec((1, 3, HW), lambda n: (n, 0, 0)),
        compiler_params=_compiler_params(),
    )(patches, wmat, gamma, beta)


# ------------------------------ host constants & JAX glue --------------------

def _interp_matrix(n_in, n_out):
    """1D linear-interp matrix (n_out, n_in), align_corners=True (numpy, host-side)."""
    if n_in == 1:
        return np.ones((n_out, 1), np.float32)
    m = np.zeros((n_out, n_in), np.float32)
    for o in range(n_out):
        c = o * (n_in - 1) / (n_out - 1)
        lo = int(np.floor(c))
        hi = min(lo + 1, n_in - 1)
        f = c - lo
        m[o, lo] += 1.0 - f
        m[o, hi] += f
    return m


def _height_terms(h):
    """Sparse height-interp taps for (2h -> 4h) bilinear: per output row i a list of
    (weight, a) with a = 2m + py indexing convT output rows."""
    uy = _interp_matrix(2 * h, 4 * h)                  # (4h, 2h)
    terms = []
    for i in range(4 * h):
        terms.append([(float(uy[i, a]), int(a)) for a in range(2 * h) if uy[i, a] != 0.0])
    return terms


def _phase_patches(x):
    """x (N, C, H, W) -> (N, 4C, H*W): 2x2 sub-pixel taps, bottom/right zero-padded.

    tap order: (m,n), (m,n+1), (m+1,n), (m+1,n+1); rows are tap-major (tap*C + c).
    """
    N, C, H, W = x.shape
    xp = jnp.pad(x, ((0, 0), (0, 0), (0, 1), (0, 1)))
    taps = [xp[:, :, dy:dy + H, dx:dx + W] for dy in (0, 1) for dx in (0, 1)]
    return jnp.concatenate(taps, axis=1).reshape(N, 4 * C, H * W)


def _conv3x3_patches(x):
    """x (N, C, H, W) -> (N, 9C, H*W): im2col for Conv2d(k=3, s=1, pad=1), (ky,kx)-major rows."""
    N, C, H, W = x.shape
    xp = jnp.pad(x, ((0, 0), (0, 0), (1, 1), (1, 1)))
    taps = [xp[:, :, ky:ky + H, kx:kx + W] for ky in range(3) for kx in range(3)]
    return jnp.concatenate(taps, axis=1).reshape(N, 9 * C, H * W)


def _phase_weights_merged(wt):
    """ConvTranspose weight (Cin, Cout, 3, 3) -> merged (4Cout, 4Cin) matrix.

    Row order px-major (row = px*2C + py*C + c), column order tap-major (matches
    _phase_patches).  Derived from oy = 2*iy + ky - 1, ox = 2*ix + kx - 1.
    """
    cin, cout = wt.shape[0], wt.shape[1]

    def g(ky, kx):
        return wt[:, :, ky, kx].T                      # (Cout, Cin)

    z = jnp.zeros((cout, cin), jnp.float32)
    p00 = jnp.concatenate([g(1, 1), z,       z,       z      ], axis=1)   # (py,px)=(0,0)
    p01 = jnp.concatenate([g(1, 2), g(1, 0), z,       z      ], axis=1)   # (0,1)
    p10 = jnp.concatenate([g(2, 1), z,       g(0, 1), z      ], axis=1)   # (1,0)
    p11 = jnp.concatenate([g(2, 2), g(2, 0), g(0, 2), g(0, 0)], axis=1)   # (1,1)
    # px-major stacking: (px=0: py=0, py=1), (px=1: py=0, py=1)
    return jnp.concatenate([p00, p10, p01, p11], axis=0).astype(MXU_DTYPE)


def prepare_params(params):
    """Precompute (once, host-side) all matmul-ready weight matrices."""
    blocks = []
    for (wt, gamma, beta) in params["blocks"]:
        cout = wt.shape[1]
        blocks.append((_phase_weights_merged(wt),
                       gamma.reshape(cout, 1).astype(jnp.float32),
                       beta.reshape(cout, 1).astype(jnp.float32)))
    wo, go, bo = params["out"]
    cin = wo.shape[1]
    wmat = wo.transpose(2, 3, 1, 0).reshape(9 * cin, 3).T.astype(MXU_DTYPE)   # (3, 9Cin)
    return {"blocks": blocks,
            "out": (wmat, go.reshape(3, 1).astype(jnp.float32),
                    bo.reshape(3, 1).astype(jnp.float32))}


# ------------------------------ model ---------------------------------------

def init_params(key, hidden_dims):
    """Deterministic synthetic parameters matching the module's shapes."""
    dims = list(reversed(hidden_dims))
    blocks = []
    for i in range(len(dims) - 1):
        cin, cout = dims[i], dims[i + 1]
        key, k1, k2, k3 = jax.random.split(key, 4)
        wt = jax.random.normal(k1, (cin, cout, 3, 3), jnp.float32) / np.sqrt(9 * cin)
        gamma = 1.0 + 0.1 * jax.random.normal(k2, (cout,), jnp.float32)
        beta = 0.1 * jax.random.normal(k3, (cout,), jnp.float32)
        blocks.append((wt, gamma, beta))
    key, k1, k2, k3 = jax.random.split(key, 4)
    cin = dims[-1]
    wo = jax.random.normal(k1, (3, cin, 3, 3), jnp.float32) / np.sqrt(9 * cin)
    go = 1.0 + 0.1 * jax.random.normal(k2, (3,), jnp.float32)
    bo = 0.1 * jax.random.normal(k3, (3,), jnp.float32)
    return {"blocks": blocks, "out": (wo, go, bo)}


def vanilla_decoder_forward(latent_z, prep):
    """latent_z (N, C0) -> (N, 3, Hout, Wout), NCHW (matches the PyTorch module)."""
    N, C0 = latent_z.shape
    x = latent_z.reshape(N, C0, 1, 1)                         # NCHW

    for (wm, gamma, beta) in prep["blocks"]:
        y = _decoder_block(x, wm, gamma, beta)                # (N, 4H, Cout, 4W) bf16
        x = jnp.transpose(y, (0, 2, 1, 3))                    # NCHW for the next patch build

    wmat, go, bo = prep["out"]
    _, _, H, W = x.shape
    patches = _conv3x3_patches(x).astype(MXU_DTYPE)           # (N, 9Cin, H*W)
    out = _output_layer(patches, wmat, go, bo)                # (N, 3, H*W) f32
    return out.reshape(N, 3, H, W)


# ------------------------------ pure-JAX reference ---------------------------

def _instance_norm_ref(x, g, b):   # x: NCHW
    mean = x.mean(axis=(2, 3), keepdims=True)
    var = ((x - mean) ** 2).mean(axis=(2, 3), keepdims=True)
    return (x - mean) * lax.rsqrt(var + EPS) * g[None, :, None, None] + b[None, :, None, None]


def _reference_forward(latent_z, params):
    N = latent_z.shape[0]
    x = latent_z.reshape(N, latent_z.shape[-1], 1, 1)
    hi = jax.lax.Precision.HIGHEST
    for (wt, g, b) in params["blocks"]:
        w_conv = jnp.flip(wt, (2, 3)).transpose(1, 0, 2, 3)       # (Cout, Cin, 3, 3)
        x = jax.lax.conv_general_dilated(
            x, w_conv, window_strides=(1, 1), padding=((1, 2), (1, 2)),
            lhs_dilation=(2, 2), dimension_numbers=("NCHW", "OIHW", "NCHW"),
            precision=hi)
        x = _instance_norm_ref(x, g, b)
        x = jnp.where(x >= 0, x, NEG_SLOPE * x)
        H, W = x.shape[2], x.shape[3]
        Uy, Ux = _interp_matrix(H, 2 * H), _interp_matrix(W, 2 * W)
        x = jnp.einsum("oh,nchw,pw->ncop", Uy, x, Ux, precision=hi)
    wo, go, bo = params["out"]
    x = jax.lax.conv_general_dilated(
        x, wo, window_strides=(1, 1), padding=((1, 1), (1, 1)),
        dimension_numbers=("NCHW", "OIHW", "NCHW"), precision=hi)
    return jnp.tanh(_instance_norm_ref(x, go, bo))


# ------------------------------ main ------------------------------------------

if __name__ == "__main__":
    # Small config: hidden_dims=[8, 16, 32]; the module reverses -> [32, 16, 8].
    # latent (2, 32) -> 1x1 -> 4x4 -> 16x16 -> output (2, 3, 16, 16).
    hidden_dims = [8, 16, 32]
    key = jax.random.PRNGKey(0)
    pkey, zkey = jax.random.split(key)
    params = init_params(pkey, list(hidden_dims))
    prep = prepare_params(params)
    latent_z = jax.random.normal(zkey, (2, hidden_dims[-1]), jnp.float32)

    fwd = jax.jit(lambda z: vanilla_decoder_forward(z, prep))
    out = jax.block_until_ready(fwd(latent_z))

    ref = _reference_forward(latent_z, params)
    assert out.shape == (2, 3, 16, 16), out.shape
    # bf16 MXU operands + bf16 inter-kernel activations / interp weights (f32 accumulation,
    # f32 InstanceNorm stats) -> tolerance relaxed vs the f32 HIGHEST-precision reference.
    np.testing.assert_allclose(np.asarray(out), np.asarray(ref), rtol=3e-2, atol=4e-2)
    print("KERNEL_OK")
</pallas_src>

<mosaic_0001>
module attributes {stable_mosaic.version = 11 : i64} {
  func.func @_decoder_block_kernel(%arg0: i32, %arg1: memref<1x128x1xbf16, #tpu.memory_space<vmem>>, %arg2: memref<64x128xbf16, #tpu.memory_space<vmem>>, %arg3: memref<16x1xf32, #tpu.memory_space<vmem>>, %arg4: memref<16x1xf32, #tpu.memory_space<vmem>>, %arg5: memref<2x1x4xbf16, #tpu.memory_space<vmem>>, %arg6: memref<1x4x16x4xbf16, #tpu.memory_space<vmem>>, %arg7: memref<64x1xbf16, #tpu.memory_space<vmem>>) attributes {dimension_semantics = [#tpu.dimension_semantics<parallel>], iteration_bounds = array<i64: 2>, scalar_prefetch = 0 : i64, scratch_operands = 1 : i64, tpu.core_type = #tpu.core_type<tc>, window_params = [{transform_indices = @transform_0, window_bounds = array<i64: 1, 128, 1>}, {pipeline_mode = #tpu.pipeline_mode<synchronous>, transform_indices = @transform_1, window_bounds = array<i64: 64, 128>}, {pipeline_mode = #tpu.pipeline_mode<synchronous>, transform_indices = @transform_2, window_bounds = array<i64: 16, 1>}, {pipeline_mode = #tpu.pipeline_mode<synchronous>, transform_indices = @transform_3, window_bounds = array<i64: 16, 1>}, {pipeline_mode = #tpu.pipeline_mode<synchronous>, transform_indices = @transform_4, window_bounds = array<i64: 2, 1, 4>}, {transform_indices = @transform_5, window_bounds = array<i64: 1, 4, 16, 4>}]} {
    %c0 = arith.constant 0 : index
    %c0_0 = arith.constant 0 : index
    %0 = vector.load %arg2[%c0, %c0_0] : memref<64x128xbf16, #tpu.memory_space<vmem>>, vector<64x128xbf16>
    %c0_1 = arith.constant 0 : index
    %c0_2 = arith.constant 0 : index
    %c0_3 = arith.constant 0 : index
    %1 = vector.load %arg1[%c0_1, %c0_2, %c0_3] : memref<1x128x1xbf16, #tpu.memory_space<vmem>>, vector<1x128x1xbf16>
    %2 = vector.shape_cast %1 : vector<1x128x1xbf16> to vector<128x1xbf16>
    %cst = arith.constant dense<0.000000e+00> : vector<64x1xf32>
    %3 = tpu.matmul %0, %2, %cst {dimension_numbers = #tpu.dot_dimension_numbers<[1], [0], [0], [1], [0, 0, 1, 1], [], []>} : vector<64x128xbf16>, vector<128x1xbf16>, vector<64x1xf32> -> vector<64x1xf32>
    %cst_4 = arith.constant dense<0.000000e+00> : vector<64xf32>
    %4 = vector.multi_reduction <add>, %3, %cst_4 [1] : vector<64x1xf32> to vector<64xf32>
    %5 = vector.shape_cast %4 : vector<64xf32> to vector<64x1xf32>
    %6 = arith.mulf %3, %3 : vector<64x1xf32>
    %cst_5 = arith.constant dense<0.000000e+00> : vector<64xf32>
    %7 = vector.multi_reduction <add>, %6, %cst_5 [1] : vector<64x1xf32> to vector<64xf32>
    %8 = vector.shape_cast %7 : vector<64xf32> to vector<64x1xf32>
    %9 = vector.extract_strided_slice %5 {offsets = [0, 0], sizes = [16, 1], strides = [1, 1]} : vector<64x1xf32> to vector<16x1xf32>
    %10 = vector.extract_strided_slice %5 {offsets = [16, 0], sizes = [16, 1], strides = [1, 1]} : vector<64x1xf32> to vector<16x1xf32>
    %11 = arith.addf %9, %10 : vector<16x1xf32>
    %12 = vector.extract_strided_slice %5 {offsets = [32, 0], sizes = [16, 1], strides = [1, 1]} : vector<64x1xf32> to vector<16x1xf32>
    %13 = arith.addf %11, %12 : vector<16x1xf32>
    %14 = vector.extract_strided_slice %5 {offsets = [48, 0], sizes = [16, 1], strides = [1, 1]} : vector<64x1xf32> to vector<16x1xf32>
    %15 = arith.addf %13, %14 : vector<16x1xf32>
    %16 = vector.extract_strided_slice %8 {offsets = [0, 0], sizes = [16, 1], strides = [1, 1]} : vector<64x1xf32> to vector<16x1xf32>
    %17 = vector.extract_strided_slice %8 {offsets = [16, 0], sizes = [16, 1], strides = [1, 1]} : vector<64x1xf32> to vector<16x1xf32>
    %18 = arith.addf %16, %17 : vector<16x1xf32>
    %19 = vector.extract_strided_slice %8 {offsets = [32, 0], sizes = [16, 1], strides = [1, 1]} : vector<64x1xf32> to vector<16x1xf32>
    %20 = arith.addf %18, %19 : vector<16x1xf32>
    %21 = vector.extract_strided_slice %8 {offsets = [48, 0], sizes = [16, 1], strides = [1, 1]} : vector<64x1xf32> to vector<16x1xf32>
    %22 = arith.addf %20, %21 : vector<16x1xf32>
    %cst_6 = arith.constant 2.500000e-01 : f32
    %23 = vector.broadcast %cst_6 : f32 to vector<16x1xf32>
    %24 = arith.mulf %15, %23 : vector<16x1xf32>
    %cst_7 = arith.constant 2.500000e-01 : f32
    %25 = vector.broadcast %cst_7 : f32 to vector<16x1xf32>
    %26 = arith.mulf %22, %25 : vector<16x1xf32>
    %27 = arith.mulf %24, %24 : vector<16x1xf32>
    %28 = arith.subf %26, %27 : vector<16x1xf32>
    %cst_8 = arith.constant 0.000000e+00 : f32
    %29 = vector.broadcast %cst_8 : f32 to vector<16x1xf32>
    %30 = arith.maximumf %28, %29 : vector<16x1xf32>
    %cst_9 = arith.constant 9.99999974E-6 : f32
    %31 = vector.broadcast %cst_9 : f32 to vector<16x1xf32>
    %32 = arith.addf %30, %31 : vector<16x1xf32>
    %33 = math.rsqrt %32 : vector<16x1xf32>
    %c0_10 = arith.constant 0 : index
    %c0_11 = arith.constant 0 : index
    %34 = vector.load %arg3[%c0_10, %c0_11] : memref<16x1xf32, #tpu.memory_space<vmem>>, vector<16x1xf32>
    %35 = arith.mulf %33, %34 : vector<16x1xf32>
    %c0_12 = arith.constant 0 : index
    %c0_13 = arith.constant 0 : index
    %36 = vector.load %arg4[%c0_12, %c0_13] : memref<16x1xf32, #tpu.memory_space<vmem>>, vector<16x1xf32>
    %37 = arith.mulf %24, %35 : vector<16x1xf32>
    %38 = arith.subf %36, %37 : vector<16x1xf32>
    %39 = tpu.concatenate %35, %35, %35, %35 in 0 : vector<16x1xf32>, vector<16x1xf32>, vector<16x1xf32>, vector<16x1xf32> -> vector<64x1xf32>
    %40 = tpu.concatenate %38, %38, %38, %38 in 0 : vector<16x1xf32>, vector<16x1xf32>, vector<16x1xf32>, vector<16x1xf32> -> vector<64x1xf32>
    %41 = arith.mulf %3, %39 : vector<64x1xf32>
    %42 = arith.addf %41, %40 : vector<64x1xf32>
    %cst_14 = arith.constant 0.000000e+00 : f32
    %43 = vector.broadcast %cst_14 : f32 to vector<64x1xf32>
    %44 = arith.cmpf oge, %42, %43 : vector<64x1xf32>
    %cst_15 = arith.constant 0.00999999977 : f32
    %45 = vector.broadcast %cst_15 : f32 to vector<64x1xf32>
    %46 = arith.mulf %45, %42 : vector<64x1xf32>
    %47 = arith.select %44, %42, %46 : vector<64x1xi1>, vector<64x1xf32>
    %48 = arith.truncf %47 : vector<64x1xf32> to vector<64x1xbf16>
    %c0_16 = arith.constant 0 : index
    %c0_17 = arith.constant 0 : index
    %49 = vector.load %arg7[%c0_16, %c0_17] : memref<64x1xbf16, #tpu.memory_space<vmem>>, vector<64x1xbf16>
    tpu.vector_store %arg7[%c0_16, %c0_17], %48 {strides = array<i32>} : memref<64x1xbf16, #tpu.memory_space<vmem>>, vector<64x1xbf16>,
    %c0_18 = arith.constant 0 : index
    %c0_19 = arith.constant 0 : index
    %c0_20 = arith.constant 0 : index
    %50 = vector.load %arg5[%c0_18, %c0_19, %c0_20] : memref<2x1x4xbf16, #tpu.memory_space<vmem>>, vector<1x1x4xbf16>
    %51 = vector.shape_cast %50 : vector<1x1x4xbf16> to vector<1x4xbf16>
    %c1 = arith.constant 1 : index
    %c0_21 = arith.constant 0 : index
    %c0_22 = arith.constant 0 : index
    %52 = vector.load %arg5[%c1, %c0_21, %c0_22] : memref<2x1x4xbf16, #tpu.memory_space<vmem>>, vector<1x1x4xbf16>
    %53 = vector.shape_cast %52 : vector<1x1x4xbf16> to vector<1x4xbf16>
    %c0_23 = arith.constant 0 : index
    %c0_24 = arith.constant 0 : index
    %54 = vector.load %arg7[%c0_23, %c0_24] : memref<64x1xbf16, #tpu.memory_space<vmem>>, vector<64x1xbf16>
    %55 = arith.extf %54 : vector<64x1xbf16> to vector<64x1xf32>
    %56 = vector.extract_strided_slice %55 {offsets = [0, 0], sizes = [32, 1], strides = [1, 1]} : vector<64x1xf32> to vector<32x1xf32>
    %57 = arith.extf %51 : vector<1x4xbf16> to vector<1x4xf32>
    %58 = vector.broadcast %56 : vector<32x1xf32> to vector<32x4xf32>
    %59 = vector.broadcast %57 : vector<1x4xf32> to vector<32x4xf32>
    %60 = arith.mulf %58, %59 : vector<32x4xf32>
    %61 = vector.extract_strided_slice %55 {offsets = [32, 0], sizes = [32, 1], strides = [1, 1]} : vector<64x1xf32> to vector<32x1xf32>
    %62 = arith.extf %53 : vector<1x4xbf16> to vector<1x4xf32>
    %63 = vector.broadcast %61 : vector<32x1xf32> to vector<32x4xf32>
    %64 = vector.broadcast %62 : vector<1x4xf32> to vector<32x4xf32>
    %65 = arith.mulf %63, %64 : vector<32x4xf32>
    %66 = arith.addf %60, %65 : vector<32x4xf32>
    %67 = vector.extract_strided_slice %66 {offsets = [0, 0], sizes = [16, 4], strides = [1, 1]} : vector<32x4xf32> to vector<16x4xf32>
    %cst_25 = arith.constant 1.000000e+00 : f32
    %68 = vector.broadcast %cst_25 : f32 to vector<16x4xf32>
    %69 = arith.mulf %67, %68 : vector<16x4xf32>
    %70 = arith.truncf %69 : vector<16x4xf32> to vector<16x4xbf16>
    %c0_26 = arith.constant 0 : index
    %c0_27 = arith.constant 0 : index
    %c0_28 = arith.constant 0 : index
    %c0_29 = arith.constant 0 : index
    %71 = vector.load %arg6[%c0_26, %c0_27, %c0_28, %c0_29] : memref<1x4x16x4xbf16, #tpu.memory_space<vmem>>, vector<1x1x16x4xbf16>
    %72 = vector.shape_cast %71 : vector<1x1x16x4xbf16> to vector<16x4xbf16>
    %73 = vector.shape_cast %70 : vector<16x4xbf16> to vector<1x1x16x4xbf16>
    tpu.vector_store %arg6[%c0_26, %c0_27, %c0_28, %c0_29], %73 {strides = array<i32>} : memref<1x4x16x4xbf16, #tpu.memory_space<vmem>>, vector<1x1x16x4xbf16>,
    %74 = vector.extract_strided_slice %66 {offsets = [0, 0], sizes = [16, 4], strides = [1, 1]} : vector<32x4xf32> to vector<16x4xf32>
    %cst_30 = arith.constant 0.666666686 : f32
    %75 = vector.broadcast %cst_30 : f32 to vector<16x4xf32>
    %76 = arith.mulf %74, %75 : vector<16x4xf32>
    %77 = vector.extract_strided_slice %66 {offsets = [16, 0], sizes = [16, 4], strides = [1, 1]} : vector<32x4xf32> to vector<16x4xf32>
    %cst_31 = arith.constant 0.333333343 : f32
    %78 = vector.broadcast %cst_31 : f32 to vector<16x4xf32>
    %79 = arith.mulf %77, %78 : vector<16x4xf32>
    %80 = arith.addf %76, %79 : vector<16x4xf32>
    %81 = arith.truncf %80 : vector<16x4xf32> to vector<16x4xbf16>
    %c0_32 = arith.constant 0 : index
    %c1_33 = arith.constant 1 : index
    %c0_34 = arith.constant 0 : index
    %c0_35 = arith.constant 0 : index
    %82 = vector.load %arg6[%c0_32, %c1_33, %c0_34, %c0_35] : memref<1x4x16x4xbf16, #tpu.memory_space<vmem>>, vector<1x1x16x4xbf16>
    %83 = vector.shape_cast %82 : vector<1x1x16x4xbf16> to vector<16x4xbf16>
    %84 = vector.shape_cast %81 : vector<16x4xbf16> to vector<1x1x16x4xbf16>
    tpu.vector_store %arg6[%c0_32, %c1_33, %c0_34, %c0_35], %84 {strides = array<i32>} : memref<1x4x16x4xbf16, #tpu.memory_space<vmem>>, vector<1x1x16x4xbf16>,
    %85 = vector.extract_strided_slice %66 {offsets = [0, 0], sizes = [16, 4], strides = [1, 1]} : vector<32x4xf32> to vector<16x4xf32>
    %cst_36 = arith.constant 0.333333343 : f32
    %86 = vector.broadcast %cst_36 : f32 to vector<16x4xf32>
    %87 = arith.mulf %85, %86 : vector<16x4xf32>
    %88 = vector.extract_strided_slice %66 {offsets = [16, 0], sizes = [16, 4], strides = [1, 1]} : vector<32x4xf32> to vector<16x4xf32>
    %cst_37 = arith.constant 0.666666686 : f32
    %89 = vector.broadcast %cst_37 : f32 to vector<16x4xf32>
    %90 = arith.mulf %88, %89 : vector<16x4xf32>
    %91 = arith.addf %87, %90 : vector<16x4xf32>
    %92 = arith.truncf %91 : vector<16x4xf32> to vector<16x4xbf16>
    %c0_38 = arith.constant 0 : index
    %c2 = arith.constant 2 : index
    %c0_39 = arith.constant 0 : index
    %c0_40 = arith.constant 0 : index
    %93 = vector.load %arg6[%c0_38, %c2, %c0_39, %c0_40] : memref<1x4x16x4xbf16, #tpu.memory_space<vmem>>, vector<1x1x16x4xbf16>
    %94 = vector.shape_cast %93 : vector<1x1x16x4xbf16> to vector<16x4xbf16>
    %95 = vector.shape_cast %92 : vector<16x4xbf16> to vector<1x1x16x4xbf16>
    tpu.vector_store %arg6[%c0_38, %c2, %c0_39, %c0_40], %95 {strides = array<i32>} : memref<1x4x16x4xbf16, #tpu.memory_space<vmem>>, vector<1x1x16x4xbf16>,
    %96 = vector.extract_strided_slice %66 {offsets = [16, 0], sizes = [16, 4], strides = [1, 1]} : vector<32x4xf32> to vector<16x4xf32>
    %cst_41 = arith.constant 1.000000e+00 : f32
    %97 = vector.broadcast %cst_41 : f32 to vector<16x4xf32>
    %98 = arith.mulf %96, %97 : vector<16x4xf32>
    %99 = arith.truncf %98 : vector<16x4xf32> to vector<16x4xbf16>
    %c0_42 = arith.constant 0 : index
    %c3 = arith.constant 3 : index
    %c0_43 = arith.constant 0 : index
    %c0_44 = arith.constant 0 : index
    %100 = vector.load %arg6[%c0_42, %c3, %c0_43, %c0_44] : memref<1x4x16x4xbf16, #tpu.memory_space<vmem>>, vector<1x1x16x4xbf16>
    %101 = vector.shape_cast %100 : vector<1x1x16x4xbf16> to vector<16x4xbf16>
    %102 = vector.shape_cast %99 : vector<16x4xbf16> to vector<1x1x16x4xbf16>
    tpu.vector_store %arg6[%c0_42, %c3, %c0_43, %c0_44], %102 {strides = array<i32>} : memref<1x4x16x4xbf16, #tpu.memory_space<vmem>>, vector<1x1x16x4xbf16>,
    return
  }
  func.func @transform_0(%arg0: i32) -> (i32, i32, i32) {
    %c0_i32 = arith.constant 0 : i32
    %c0_i32_0 = arith.constant 0 : i32
    %c0_i32_1 = arith.constant 0 : i32
    return %arg0, %c0_i32, %c0_i32_0 : i32, i32, i32
  }
  func.func @transform_1(%arg0: i32) -> (i32, i32) {
    %c0_i32 = arith.constant 0 : i32
    %c0_i32_0 = arith.constant 0 : i32
    %c0_i32_1 = arith.constant 0 : i32
    return %c0_i32, %c0_i32_0 : i32, i32
  }
  func.func @transform_2(%arg0: i32) -> (i32, i32) {
    %c0_i32 = arith.constant 0 : i32
    %c0_i32_0 = arith.constant 0 : i32
    %c0_i32_1 = arith.constant 0 : i32
    return %c0_i32, %c0_i32_0 : i32, i32
  }
  func.func @transform_3(%arg0: i32) -> (i32, i32) {
    %c0_i32 = arith.constant 0 : i32
    %c0_i32_0 = arith.constant 0 : i32
    %c0_i32_1 = arith.constant 0 : i32
    return %c0_i32, %c0_i32_0 : i32, i32
  }
  func.func @transform_4(%arg0: i32) -> (i32, i32, i32) {
    %c0_i32 = arith.constant 0 : i32
    %c0_i32_0 = arith.constant 0 : i32
    %c0_i32_1 = arith.constant 0 : i32
    %c0_i32_2 = arith.constant 0 : i32
    return %c0_i32, %c0_i32_0, %c0_i32_1 : i32, i32, i32
  }
  func.func @transform_5(%arg0: i32) -> (i32, i32, i32, i32) {
    %c0_i32 = arith.constant 0 : i32
    %c0_i32_0 = arith.constant 0 : i32
    %c0_i32_1 = arith.constant 0 : i32
    %c0_i32_2 = arith.constant 0 : i32
    return %arg0, %c0_i32, %c0_i32_0, %c0_i32_1 : i32, i32, i32, i32
  }
}

module attributes {stable_mosaic.version = 11 : i64} {
  func.func @_decoder_block_kernel(%arg0: i32, %arg1: memref<1x64x16xbf16, #tpu.memory_space<vmem>>, %arg2: memref<32x64xbf16, #tpu.memory_space<vmem>>, %arg3: memref<8x1xf32, #tpu.memory_space<vmem>>, %arg4: memref<8x1xf32, #tpu.memory_space<vmem>>, %arg5: memref<2x4x16xbf16, #tpu.memory_space<vmem>>, %arg6: memref<1x16x8x16xbf16, #tpu.memory_space<vmem>>, %arg7: memref<32x16xbf16, #tpu.memory_space<vmem>>) attributes {dimension_semantics = [#tpu.dimension_semantics<parallel>], iteration_bounds = array<i64: 2>, scalar_prefetch = 0 : i64, scratch_operands = 1 : i64, tpu.core_type = #tpu.core_type<tc>, window_params = [{transform_indices = @transform_0, window_bounds = array<i64: 1, 64, 16>}, {pipeline_mode = #tpu.pipeline_mode<synchronous>, transform_indices = @transform_1, window_bounds = array<i64: 32, 64>}, {pipeline_mode = #tpu.pipeline_mode<synchronous>, transform_indices = @transform_2, window_bounds = array<i64: 8, 1>}, {pipeline_mode = #tpu.pipeline_mode<synchronous>, transform_indices = @transform_3, window_bounds = array<i64: 8, 1>}, {pipeline_mode = #tpu.pipeline_mode<synchronous>, transform_indices = @transform_4, window_bounds = array<i64: 2, 4, 16>}, {transform_indices = @transform_5, window_bounds = array<i64: 1, 16, 8, 16>}]} {
    %c0 = arith.constant 0 : index
    %c0_0 = arith.constant 0 : index
    %0 = vector.load %arg2[%c0, %c0_0] : memref<32x64xbf16, #tpu.memory_space<vmem>>, vector<32x64xbf16>
    %c0_1 = arith.constant 0 : index
    %c0_2 = arith.constant 0 : index
    %c0_3 = arith.constant 0 : index
    %1 = vector.load %arg1[%c0_1, %c0_2, %c0_3] : memref<1x64x16xbf16, #tpu.memory_space<vmem>>, vector<1x64x16xbf16>
    %2 = vector.shape_cast %1 : vector<1x64x16xbf16> to vector<64x16xbf16>
    %cst = arith.constant dense<0.000000e+00> : vector<32x16xf32>
    %3 = tpu.matmul %0, %2, %cst {dimension_numbers = #tpu.dot_dimension_numbers<[1], [0], [0], [1], [0, 0, 1, 1], [], []>} : vector<32x64xbf16>, vector<64x16xbf16>, vector<32x16xf32> -> vector<32x16xf32>
    %cst_4 = arith.constant dense<0.000000e+00> : vector<32xf32>
    %4 = vector.multi_reduction <add>, %3, %cst_4 [1] : vector<32x16xf32> to vector<32xf32>
    %5 = vector.shape_cast %4 : vector<32xf32> to vector<32x1xf32>
    %6 = arith.mulf %3, %3 : vector<32x16xf32>
    %cst_5 = arith.constant dense<0.000000e+00> : vector<32xf32>
    %7 = vector.multi_reduction <add>, %6, %cst_5 [1] : vector<32x16xf32> to vector<32xf32>
    %8 = vector.shape_cast %7 : vector<32xf32> to vector<32x1xf32>
    %9 = vector.extract_strided_slice %5 {offsets = [0, 0], sizes = [8, 1], strides = [1, 1]} : vector<32x1xf32> to vector<8x1xf32>
    %10 = vector.extract_strided_slice %5 {offsets = [8, 0], sizes = [8, 1], strides = [1, 1]} : vector<32x1xf32> to vector<8x1xf32>
    %11 = arith.addf %9, %10 : vector<8x1xf32>
    %12 = vector.extract_strided_slice %5 {offsets = [16, 0], sizes = [8, 1], strides = [1, 1]} : vector<32x1xf32> to vector<8x1xf32>
    %13 = arith.addf %11, %12 : vector<8x1xf32>
    %14 = vector.extract_strided_slice %5 {offsets = [24, 0], sizes = [8, 1], strides = [1, 1]} : vector<32x1xf32> to vector<8x1xf32>
    %15 = arith.addf %13, %14 : vector<8x1xf32>
    %16 = vector.extract_strided_slice %8 {offsets = [0, 0], sizes = [8, 1], strides = [1, 1]} : vector<32x1xf32> to vector<8x1xf32>
    %17 = vector.extract_strided_slice %8 {offsets = [8, 0], sizes = [8, 1], strides = [1, 1]} : vector<32x1xf32> to vector<8x1xf32>
    %18 = arith.addf %16, %17 : vector<8x1xf32>
    %19 = vector.extract_strided_slice %8 {offsets = [16, 0], sizes = [8, 1], strides = [1, 1]} : vector<32x1xf32> to vector<8x1xf32>
    %20 = arith.addf %18, %19 : vector<8x1xf32>
    %21 = vector.extract_strided_slice %8 {offsets = [24, 0], sizes = [8, 1], strides = [1, 1]} : vector<32x1xf32> to vector<8x1xf32>
    %22 = arith.addf %20, %21 : vector<8x1xf32>
    %cst_6 = arith.constant 1.562500e-02 : f32
    %23 = vector.broadcast %cst_6 : f32 to vector<8x1xf32>
    %24 = arith.mulf %15, %23 : vector<8x1xf32>
    %cst_7 = arith.constant 1.562500e-02 : f32
    %25 = vector.broadcast %cst_7 : f32 to vector<8x1xf32>
    %26 = arith.mulf %22, %25 : vector<8x1xf32>
    %27 = arith.mulf %24, %24 : vector<8x1xf32>
    %28 = arith.subf %26, %27 : vector<8x1xf32>
    %cst_8 = arith.constant 0.000000e+00 : f32
    %29 = vector.broadcast %cst_8 : f32 to vector<8x1xf32>
    %30 = arith.maximumf %28, %29 : vector<8x1xf32>
    %cst_9 = arith.constant 9.99999974E-6 : f32
    %31 = vector.broadcast %cst_9 : f32 to vector<8x1xf32>
    %32 = arith.addf %30, %31 : vector<8x1xf32>
    %33 = math.rsqrt %32 : vector<8x1xf32>
    %c0_10 = arith.constant 0 : index
    %c0_11 = arith.constant 0 : index
    %34 = vector.load %arg3[%c0_10, %c0_11] : memref<8x1xf32, #tpu.memory_space<vmem>>, vector<8x1xf32>
    %35 = arith.mulf %33, %34 : vector<8x1xf32>
    %c0_12 = arith.constant 0 : index
    %c0_13 = arith.constant 0 : index
    %36 = vector.load %arg4[%c0_12, %c0_13] : memref<8x1xf32, #tpu.memory_space<vmem>>, vector<8x1xf32>
    %37 = arith.mulf %24, %35 : vector<8x1xf32>
    %38 = arith.subf %36, %37 : vector<8x1xf32>
    %39 = tpu.concatenate %35, %35, %35, %35 in 0 : vector<8x1xf32>, vector<8x1xf32>, vector<8x1xf32>, vector<8x1xf32> -> vector<32x1xf32>
    %40 = tpu.concatenate %38, %38, %38, %38 in 0 : vector<8x1xf32>, vector<8x1xf32>, vector<8x1xf32>, vector<8x1xf32> -> vector<32x1xf32>
    %41 = vector.broadcast %39 : vector<32x1xf32> to vector<32x16xf32>
    %42 = arith.mulf %3, %41 : vector<32x16xf32>
    %43 = vector.broadcast %40 : vector<32x1xf32> to vector<32x16xf32>
    %44 = arith.addf %42, %43 : vector<32x16xf32>
    %cst_14 = arith.constant 0.000000e+00 : f32
    %45 = vector.broadcast %cst_14 : f32 to vector<32x16xf32>
    %46 = arith.cmpf oge, %44, %45 : vector<32x16xf32>
    %cst_15 = arith.constant 0.00999999977 : f32
    %47 = vector.broadcast %cst_15 : f32 to vector<32x16xf32>
    %48 = arith.mulf %47, %44 : vector<32x16xf32>
    %49 = arith.select %46, %44, %48 : vector<32x16xi1>, vector<32x16xf32>
    %50 = arith.truncf %49 : vector<32x16xf32> to vector<32x16xbf16>
    %c0_16 = arith.constant 0 : index
    %c0_17 = arith.constant 0 : index
    %51 = vector.load %arg7[%c0_16, %c0_17] : memref<32x16xbf16, #tpu.memory_space<vmem>>, vector<32x16xbf16>
    tpu.vector_store %arg7[%c0_16, %c0_17], %50 {strides = array<i32>} : memref<32x16xbf16, #tpu.memory_space<vmem>>, vector<32x16xbf16>,
    %c0_18 = arith.constant 0 : index
    %c0_19 = arith.constant 0 : index
    %c0_20 = arith.constant 0 : index
    %52 = vector.load %arg5[%c0_18, %c0_19, %c0_20] : memref<2x4x16xbf16, #tpu.memory_space<vmem>>, vector<1x4x16xbf16>
    %53 = vector.shape_cast %52 : vector<1x4x16xbf16> to vector<4x16xbf16>
    %c1 = arith.constant 1 : index
    %c0_21 = arith.constant 0 : index
    %c0_22 = arith.constant 0 : index
    %54 = vector.load %arg5[%c1, %c0_21, %c0_22] : memref<2x4x16xbf16, #tpu.memory_space<vmem>>, vector<1x4x16xbf16>
    %55 = vector.shape_cast %54 : vector<1x4x16xbf16> to vector<4x16xbf16>
    %c0_23 = arith.constant 0 : index
    %c0_24 = arith.constant 0 : index
    %56 = vector.load %arg7[%c0_23, %c0_24] : memref<32x16xbf16, #tpu.memory_space<vmem>>, vector<32x4xbf16>
    %57 = vector.extract_strided_slice %56 {offsets = [0, 0], sizes = [16, 4], strides = [1, 1]} : vector<32x4xbf16> to vector<16x4xbf16>
    %cst_25 = arith.constant dense<0.000000e+00> : vector<16x16xf32>
    %58 = tpu.matmul %57, %53, %cst_25 {dimension_numbers = #tpu.dot_dimension_numbers<[1], [0], [0], [1], [0, 0, 1, 1], [], []>} : vector<16x4xbf16>, vector<4x16xbf16>, vector<16x16xf32> -> vector<16x16xf32>
    %59 = vector.extract_strided_slice %56 {offsets = [16, 0], sizes = [16, 4], strides = [1, 1]} : vector<32x4xbf16> to vector<16x4xbf16>
    %cst_26 = arith.constant dense<0.000000e+00> : vector<16x16xf32>
    %60 = tpu.matmul %59, %55, %cst_26 {dimension_numbers = #tpu.dot_dimension_numbers<[1], [0], [0], [1], [0, 0, 1, 1], [], []>} : vector<16x4xbf16>, vector<4x16xbf16>, vector<16x16xf32> -> vector<16x16xf32>
    %61 = arith.addf %58, %60 : vector<16x16xf32>
    %c0_27 = arith.constant 0 : index
    %c4 = arith.constant 4 : index
    %62 = vector.load %arg7[%c0_27, %c4] : memref<32x16xbf16, #tpu.memory_space<vmem>>, vector<32x4xbf16>
    %63 = vector.extract_strided_slice %62 {offsets = [0, 0], sizes = [16, 4], strides = [1, 1]} : vector<32x4xbf16> to vector<16x4xbf16>
    %cst_28 = arith.constant dense<0.000000e+00> : vector<16x16xf32>
    %64 = tpu.matmul %63, %53, %cst_28 {dimension_numbers = #tpu.dot_dimension_numbers<[1], [0], [0], [1], [0, 0, 1, 1], [], []>} : vector<16x4xbf16>, vector<4x16xbf16>, vector<16x16xf32> -> vector<16x16xf32>
    %65 = vector.extract_strided_slice %62 {offsets = [16, 0], sizes = [16, 4], strides = [1, 1]} : vector<32x4xbf16> to vector<16x4xbf16>
    %cst_29 = arith.constant dense<0.000000e+00> : vector<16x16xf32>
    %66 = tpu.matmul %65, %55, %cst_29 {dimension_numbers = #tpu.dot_dimension_numbers<[1], [0], [0], [1], [0, 0, 1, 1], [], []>} : vector<16x4xbf16>, vector<4x16xbf16>, vector<16x16xf32> -> vector<16x16xf32>
    %67 = arith.addf %64, %66 : vector<16x16xf32>
    %c0_30 = arith.constant 0 : index
    %c8 = arith.constant 8 : index
    %68 = vector.load %arg7[%c0_30, %c8] : memref<32x16xbf16, #tpu.memory_space<vmem>>, vector<32x4xbf16>
    %69 = vector.extract_strided_slice %68 {offsets = [0, 0], sizes = [16, 4], strides = [1, 1]} : vector<32x4xbf16> to vector<16x4xbf16>
    %cst_31 = arith.constant dense<0.000000e+00> : vector<16x16xf32>
    %70 = tpu.matmul %69, %53, %cst_31 {dimension_numbers = #tpu.dot_dimension_numbers<[1], [0], [0], [1], [0, 0, 1, 1], [], []>} : vector<16x4xbf16>, vector<4x16xbf16>, vector<16x16xf32> -> vector<16x16xf32>
    %71 = vector.extract_strided_slice %68 {offsets = [16, 0], sizes = [16, 4], strides = [1, 1]} : vector<32x4xbf16> to vector<16x4xbf16>
    %cst_32 = arith.constant dense<0.000000e+00> : vector<16x16xf32>
    %72 = tpu.matmul %71, %55, %cst_32 {dimension_numbers = #tpu.dot_dimension_numbers<[1], [0], [0], [1], [0, 0, 1, 1], [], []>} : vector<16x4xbf16>, vector<4x16xbf16>, vector<16x16xf32> -> vector<16x16xf32>
    %73 = arith.addf %70, %72 : vector<16x16xf32>
    %c0_33 = arith.constant 0 : index
    %c12 = arith.constant 12 : index
    %74 = vector.load %arg7[%c0_33, %c12] : memref<32x16xbf16, #tpu.memory_space<vmem>>, vector<32x4xbf16>
    %75 = vector.extract_strided_slice %74 {offsets = [0, 0], sizes = [16, 4], strides = [1, 1]} : vector<32x4xbf16> to vector<16x4xbf16>
    %cst_34 = arith.constant dense<0.000000e+00> : vector<16x16xf32>
    %76 = tpu.matmul %75, %53, %cst_34 {dimension_numbers = #tpu.dot_dimension_numbers<[1], [0], [0], [1], [0, 0, 1, 1], [], []>} : vector<16x4xbf16>, vector<4x16xbf16>, vector<16x16xf32> -> vector<16x16xf32>
    %77 = vector.extract_strided_slice %74 {offsets = [16, 0], sizes = [16, 4], strides = [1, 1]} : vector<32x4xbf16> to vector<16x4xbf16>
    %cst_35 = arith.constant dense<0.000000e+00> : vector<16x16xf32>
    %78 = tpu.matmul %77, %55, %cst_35 {dimension_numbers = #tpu.dot_dimension_numbers<[1], [0], [0], [1], [0, 0, 1, 1], [], []>} : vector<16x4xbf16>, vector<4x16xbf16>, vector<16x16xf32> -> vector<16x16xf32>
    %79 = arith.addf %76, %78 : vector<16x16xf32>
    %80 = vector.extract_strided_slice %61 {offsets = [0, 0], sizes = [8, 16], strides = [1, 1]} : vector<16x16xf32> to vector<8x16xf32>
    %cst_36 = arith.constant 1.000000e+00 : f32
    %81 = vector.broadcast %cst_36 : f32 to vector<8x16xf32>
    %82 = arith.mulf %80, %81 : vector<8x16xf32>
    %83 = arith.truncf %82 : vector<8x16xf32> to vector<8x16xbf16>
    %c0_37 = arith.constant 0 : index
    %c0_38 = arith.constant 0 : index
    %c0_39 = arith.constant 0 : index
    %c0_40 = arith.constant 0 : index
    %84 = vector.load %arg6[%c0_37, %c0_38, %c0_39, %c0_40] : memref<1x16x8x16xbf16, #tpu.memory_space<vmem>>, vector<1x1x8x16xbf16>
    %85 = vector.shape_cast %84 : vector<1x1x8x16xbf16> to vector<8x16xbf16>
    %86 = vector.shape_cast %83 : vector<8x16xbf16> to vector<1x1x8x16xbf16>
    tpu.vector_store %arg6[%c0_37, %c0_38, %c0_39, %c0_40], %86 {strides = array<i32>} : memref<1x16x8x16xbf16, #tpu.memory_space<vmem>>, vector<1x1x8x16xbf16>,
    %87 = vector.extract_strided_slice %61 {offsets = [0, 0], sizes = [8, 16], strides = [1, 1]} : vector<16x16xf32> to vector<8x16xf32>
    %cst_41 = arith.constant 0.533333361 : f32
    %88 = vector.broadcast %cst_41 : f32 to vector<8x16xf32>
    %89 = arith.mulf %87, %88 : vector<8x16xf32>
    %90 = vector.extract_strided_slice %61 {offsets = [8, 0], sizes = [8, 16], strides = [1, 1]} : vector<16x16xf32> to vector<8x16xf32>
    %cst_42 = arith.constant 0.466666669 : f32
    %91 = vector.broadcast %cst_42 : f32 to vector<8x16xf32>
    %92 = arith.mulf %90, %91 : vector<8x16xf32>
    %93 = arith.addf %89, %92 : vector<8x16xf32>
    %94 = arith.truncf %93 : vector<8x16xf32> to vector<8x16xbf16>
    %c0_43 = arith.constant 0 : index
    %c1_44 = arith.constant 1 : index
    %c0_45 = arith.constant 0 : index
    %c0_46 = arith.constant 0 : index
    %95 = vector.load %arg6[%c0_43, %c1_44, %c0_45, %c0_46] : memref<1x16x8x16xbf16, #tpu.memory_space<vmem>>, vector<1x1x8x16xbf16>
    %96 = vector.shape_cast %95 : vector<1x1x8x16xbf16> to vector<8x16xbf16>
    %97 = vector.shape_cast %94 : vector<8x16xbf16> to vector<1x1x8x16xbf16>
    tpu.vector_store %arg6[%c0_43, %c1_44, %c0_45, %c0_46], %97 {strides = array<i32>} : memref<1x16x8x16xbf16, #tpu.memory_space<vmem>>, vector<1x1x8x16xbf16>,
    %98 = vector.extract_strided_slice %61 {offsets = [0, 0], sizes = [8, 16], strides = [1, 1]} : vector<16x16xf32> to vector<8x16xf32>
    %cst_47 = arith.constant 0.0666666701 : f32
    %99 = vector.broadcast %cst_47 : f32 to vector<8x16xf32>
    %100 = arith.mulf %98, %99 : vector<8x16xf32>
    %101 = vector.extract_strided_slice %61 {offsets = [8, 0], sizes = [8, 16], strides = [1, 1]} : vector<16x16xf32> to vector<8x16xf32>
    %cst_48 = arith.constant 0.933333337 : f32
    %102 = vector.broadcast %cst_48 : f32 to vector<8x16xf32>
    %103 = arith.mulf %101, %102 : vector<8x16xf32>
    %104 = arith.addf %100, %103 : vector<8x16xf32>
    %105 = arith.truncf %104 : vector<8x16xf32> to vector<8x16xbf16>
    %c0_49 = arith.constant 0 : index
    %c2 = arith.constant 2 : index
    %c0_50 = arith.constant 0 : index
    %c0_51 = arith.constant 0 : index
    %106 = vector.load %arg6[%c0_49, %c2, %c0_50, %c0_51] : memref<1x16x8x16xbf16, #tpu.memory_space<vmem>>, vector<1x1x8x16xbf16>
    %107 = vector.shape_cast %106 : vector<1x1x8x16xbf16> to vector<8x16xbf16>
    %108 = vector.shape_cast %105 : vector<8x16xbf16> to vector<1x1x8x16xbf16>
    tpu.vector_store %arg6[%c0_49, %c2, %c0_50, %c0_51], %108 {strides = array<i32>} : memref<1x16x8x16xbf16, #tpu.memory_space<vmem>>, vector<1x1x8x16xbf16>,
    %109 = vector.extract_strided_slice %61 {offsets = [8, 0], sizes = [8, 16], strides = [1, 1]} : vector<16x16xf32> to vector<8x16xf32>
    %cst_52 = arith.constant 6.000000e-01 : f32
    %110 = vector.broadcast %cst_52 : f32 to vector<8x16xf32>
    %111 = arith.mulf %109, %110 : vector<8x16xf32>
    %112 = vector.extract_strided_slice %67 {offsets = [0, 0], sizes = [8, 16], strides = [1, 1]} : vector<16x16xf32> to vector<8x16xf32>
    %cst_53 = arith.constant 4.000000e-01 : f32
    %113 = vector.broadcast %cst_53 : f32 to vector<8x16xf32>
    %114 = arith.mulf %112, %113 : vector<8x16xf32>
    %115 = arith.addf %111, %114 : vector<8x16xf32>
    %116 = arith.truncf %115 : vector<8x16xf32> to vector<8x16xbf16>
    %c0_54 = arith.constant 0 : index
    %c3 = arith.constant 3 : index
    %c0_55 = arith.constant 0 : index
    %c0_56 = arith.constant 0 : index
    %117 = vector.load %arg6[%c0_54, %c3, %c0_55, %c0_56] : memref<1x16x8x16xbf16, #tpu.memory_space<vmem>>, vector<1x1x8x16xbf16>
    %118 = vector.shape_cast %117 : vector<1x1x8x16xbf16> to vector<8x16xbf16>
    %119 = vector.shape_cast %116 : vector<8x16xbf16> to vector<1x1x8x16xbf16>
    tpu.vector_store %arg6[%c0_54, %c3, %c0_55, %c0_56], %119 {strides = array<i32>} : memref<1x16x8x16xbf16, #tpu.memory_space<vmem>>, vector<1x1x8x16xbf16>,
    %120 = vector.extract_strided_slice %61 {offsets = [8, 0], sizes = [8, 16], strides = [1, 1]} : vector<16x16xf32> to vector<8x16xf32>
    %cst_57 = arith.constant 0.13333334 : f32
    %121 = vector.broadcast %cst_57 : f32 to vector<8x16xf32>
    %122 = arith.mulf %120, %121 : vector<8x16xf32>
    %123 = vector.extract_strided_slice %67 {offsets = [0, 0], sizes = [8, 16], strides = [1, 1]} : vector<16x16xf32> to vector<8x16xf32>
    %cst_58 = arith.constant 0.866666674 : f32
    %124 = vector.broadcast %cst_58 : f32 to vector<8x16xf32>
    %125 = arith.mulf %123, %124 : vector<8x16xf32>
    %126 = arith.addf %122, %125 : vector<8x16xf32>
    %127 = arith.truncf %126 : vector<8x16xf32> to vector<8x16xbf16>
    %c0_59 = arith.constant 0 : index
    %c4_60 = arith.constant 4 : index
    %c0_61 = arith.constant 0 : index
    %c0_62 = arith.constant 0 : index
    %128 = vector.load %arg6[%c0_59, %c4_60, %c0_61, %c0_62] : memref<1x16x8x16xbf16, #tpu.memory_space<vmem>>, vector<1x1x8x16xbf16>
    %129 = vector.shape_cast %128 : vector<1x1x8x16xbf16> to vector<8x16xbf16>
    %130 = vector.shape_cast %127 : vector<8x16xbf16> to vector<1x1x8x16xbf16>
    tpu.vector_store %arg6[%c0_59, %c4_60, %c0_61, %c0_62], %130 {strides = array<i32>} : memref<1x16x8x16xbf16, #tpu.memory_space<vmem>>, vector<1x1x8x16xbf16>,
    %131 = vector.extract_strided_slice %67 {offsets = [0, 0], sizes = [8, 16], strides = [1, 1]} : vector<16x16xf32> to vector<8x16xf32>
    %cst_63 = arith.constant 0.666666686 : f32
    %132 = vector.broadcast %cst_63 : f32 to vector<8x16xf32>
    %133 = arith.mulf %131, %132 : vector<8x16xf32>
    %134 = vector.extract_strided_slice %67 {offsets = [8, 0], sizes = [8, 16], strides = [1, 1]} : vector<16x16xf32> to vector<8x16xf32>
    %cst_64 = arith.constant 0.333333343 : f32
    %135 = vector.broadcast %cst_64 : f32 to vector<8x16xf32>
    %136 = arith.mulf %134, %135 : vector<8x16xf32>
    %137 = arith.addf %133, %136 : vector<8x16xf32>
    %138 = arith.truncf %137 : vector<8x16xf32> to vector<8x16xbf16>
    %c0_65 = arith.constant 0 : index
    %c5 = arith.constant 5 : index
    %c0_66 = arith.constant 0 : index
    %c0_67 = arith.constant 0 : index
    %139 = vector.load %arg6[%c0_65, %c5, %c0_66, %c0_67] : memref<1x16x8x16xbf16, #tpu.memory_space<vmem>>, vector<1x1x8x16xbf16>
    %140 = vector.shape_cast %139 : vector<1x1x8x16xbf16> to vector<8x16xbf16>
    %141 = vector.shape_cast %138 : vector<8x16xbf16> to vector<1x1x8x16xbf16>
    tpu.vector_store %arg6[%c0_65, %c5, %c0_66, %c0_67], %141 {strides = array<i32>} : memref<1x16x8x16xbf16, #tpu.memory_space<vmem>>, vector<1x1x8x16xbf16>,
    %142 = vector.extract_strided_slice %67 {offsets = [0, 0], sizes = [8, 16], strides = [1, 1]} : vector<16x16xf32> to vector<8x16xf32>
    %cst_68 = arith.constant 2.000000e-01 : f32
    %143 = vector.broadcast %cst_68 : f32 to vector<8x16xf32>
    %144 = arith.mulf %142, %143 : vector<8x16xf32>
    %145 = vector.extract_strided_slice %67 {offsets = [8, 0], sizes = [8, 16], strides = [1, 1]} : vector<16x16xf32> to vector<8x16xf32>
    %cst_69 = arith.constant 8.000000e-01 : f32
    %146 = vector.broadcast %cst_69 : f32 to vector<8x16xf32>
    %147 = arith.mulf %145, %146 : vector<8x16xf32>
    %148 = arith.addf %144, %147 : vector<8x16xf32>
    %149 = arith.truncf %148 : vector<8x16xf32> to vector<8x16xbf16>
    %c0_70 = arith.constant 0 : index
    %c6 = arith.constant 6 : index
    %c0_71 = arith.constant 0 : index
    %c0_72 = arith.constant 0 : index
    %150 = vector.load %arg6[%c0_70, %c6, %c0_71, %c0_72] : memref<1x16x8x16xbf16, #tpu.memory_space<vmem>>, vector<1x1x8x16xbf16>
    %151 = vector.shape_cast %150 : vector<1x1x8x16xbf16> to vector<8x16xbf16>
    %152 = vector.shape_cast %149 : vector<8x16xbf16> to vector<1x1x8x16xbf16>
    tpu.vector_store %arg6[%c0_70, %c6, %c0_71, %c0_72], %152 {strides = array<i32>} : memref<1x16x8x16xbf16, #tpu.memory_space<vmem>>, vector<1x1x8x16xbf16>,
    %153 = vector.extract_strided_slice %67 {offsets = [8, 0], sizes = [8, 16], strides = [1, 1]} : vector<16x16xf32> to vector<8x16xf32>
    %cst_73 = arith.constant 0.733333349 : f32
    %154 = vector.broadcast %cst_73 : f32 to vector<8x16xf32>
    %155 = arith.mulf %153, %154 : vector<8x16xf32>
    %156 = vector.extract_strided_slice %73 {offsets = [0, 0], sizes = [8, 16], strides = [1, 1]} : vector<16x16xf32> to vector<8x16xf32>
    %cst_74 = arith.constant 0.266666681 : f32
    %157 = vector.broadcast %cst_74 : f32 to vector<8x16xf32>
    %158 = arith.mulf %156, %157 : vector<8x16xf32>
    %159 = arith.addf %155, %158 : vector<8x16xf32>
    %160 = arith.truncf %159 : vector<8x16xf32> to vector<8x16xbf16>
    %c0_75 = arith.constant 0 : index
    %c7 = arith.constant 7 : index
    %c0_76 = arith.constant 0 : index
    %c0_77 = arith.constant 0 : index
    %161 = vector.load %arg6[%c0_75, %c7, %c0_76, %c0_77] : memref<1x16x8x16xbf16, #tpu.memory_space<vmem>>, vector<1x1x8x16xbf16>
    %162 = vector.shape_cast %161 : vector<1x1x8x16xbf16> to vector<8x16xbf16>
    %163 = vector.shape_cast %160 : vector<8x16xbf16> to vector<1x1x8x16xbf16>
    tpu.vector_store %arg6[%c0_75, %c7, %c0_76, %c0_77], %163 {strides = array<i32>} : memref<1x16x8x16xbf16, #tpu.memory_space<vmem>>, vector<1x1x8x16xbf16>,
    %164 = vector.extract_strided_slice %67 {offsets = [8, 0], sizes = [8, 16], strides = [1, 1]} : vector<16x16xf32> to vector<8x16xf32>
    %cst_78 = arith.constant 0.266666681 : f32
    %165 = vector.broadcast %cst_78 : f32 to vector<8x16xf32>
    %166 = arith.mulf %164, %165 : vector<8x16xf32>
    %167 = vector.extract_strided_slice %73 {offsets = [0, 0], sizes = [8, 16], strides = [1, 1]} : vector<16x16xf32> to vector<8x16xf32>
    %cst_79 = arith.constant 0.733333349 : f32
    %168 = vector.broadcast %cst_79 : f32 to vector<8x16xf32>
    %169 = arith.mulf %167, %168 : vector<8x16xf32>
    %170 = arith.addf %166, %169 : vector<8x16xf32>
    %171 = arith.truncf %170 : vector<8x16xf32> to vector<8x16xbf16>
    %c0_80 = arith.constant 0 : index
    %c8_81 = arith.constant 8 : index
    %c0_82 = arith.constant 0 : index
    %c0_83 = arith.constant 0 : index
    %172 = vector.load %arg6[%c0_80, %c8_81, %c0_82, %c0_83] : memref<1x16x8x16xbf16, #tpu.memory_space<vmem>>, vector<1x1x8x16xbf16>
    %173 = vector.shape_cast %172 : vector<1x1x8x16xbf16> to vector<8x16xbf16>
    %174 = vector.shape_cast %171 : vector<8x16xbf16> to vector<1x1x8x16xbf16>
    tpu.vector_store %arg6[%c0_80, %c8_81, %c0_82, %c0_83], %174 {strides = array<i32>} : memref<1x16x8x16xbf16, #tpu.memory_space<vmem>>, vector<1x1x8x16xbf16>,
    %175 = vector.extract_strided_slice %73 {offsets = [0, 0], sizes = [8, 16], strides = [1, 1]} : vector<16x16xf32> to vector<8x16xf32>
    %cst_84 = arith.constant 8.000000e-01 : f32
    %176 = vector.broadcast %cst_84 : f32 to vector<8x16xf32>
    %177 = arith.mulf %175, %176 : vector<8x16xf32>
    %178 = vector.extract_strided_slice %73 {offsets = [8, 0], sizes = [8, 16], strides = [1, 1]} : vector<16x16xf32> to vector<8x16xf32>
    %cst_85 = arith.constant 2.000000e-01 : f32
    %179 = vector.broadcast %cst_85 : f32 to vector<8x16xf32>
    %180 = arith.mulf %178, %179 : vector<8x16xf32>
    %181 = arith.addf %177, %180 : vector<8x16xf32>
    %182 = arith.truncf %181 : vector<8x16xf32> to vector<8x16xbf16>
    %c0_86 = arith.constant 0 : index
    %c9 = arith.constant 9 : index
    %c0_87 = arith.constant 0 : index
    %c0_88 = arith.constant 0 : index
    %183 = vector.load %arg6[%c0_86, %c9, %c0_87, %c0_88] : memref<1x16x8x16xbf16, #tpu.memory_space<vmem>>, vector<1x1x8x16xbf16>
    %184 = vector.shape_cast %183 : vector<1x1x8x16xbf16> to vector<8x16xbf16>
    %185 = vector.shape_cast %182 : vector<8x16xbf16> to vector<1x1x8x16xbf16>
    tpu.vector_store %arg6[%c0_86, %c9, %c0_87, %c0_88], %185 {strides = array<i32>} : memref<1x16x8x16xbf16, #tpu.memory_space<vmem>>, vector<1x1x8x16xbf16>,
    %186 = vector.extract_strided_slice %73 {offsets = [0, 0], sizes = [8, 16], strides = [1, 1]} : vector<16x16xf32> to vector<8x16xf32>
    %cst_89 = arith.constant 0.333333343 : f32
    %187 = vector.broadcast %cst_89 : f32 to vector<8x16xf32>
    %188 = arith.mulf %186, %187 : vector<8x16xf32>
    %189 = vector.extract_strided_slice %73 {offsets = [8, 0], sizes = [8, 16], strides = [1, 1]} : vector<16x16xf32> to vector<8x16xf32>
    %cst_90 = arith.constant 0.666666686 : f32
    %190 = vector.broadcast %cst_90 : f32 to vector<8x16xf32>
    %191 = arith.mulf %189, %190 : vector<8x16xf32>
    %192 = arith.addf %188, %191 : vector<8x16xf32>
    %193 = arith.truncf %192 : vector<8x16xf32> to vector<8x16xbf16>
    %c0_91 = arith.constant 0 : index
    %c10 = arith.constant 10 : index
    %c0_92 = arith.constant 0 : index
    %c0_93 = arith.constant 0 : index
    %194 = vector.load %arg6[%c0_91, %c10, %c0_92, %c0_93] : memref<1x16x8x16xbf16, #tpu.memory_space<vmem>>, vector<1x1x8x16xbf16>
    %195 = vector.shape_cast %194 : vector<1x1x8x16xbf16> to vector<8x16xbf16>
    %196 = vector.shape_cast %193 : vector<8x16xbf16> to vector<1x1x8x16xbf16>
    tpu.vector_store %arg6[%c0_91, %c10, %c0_92, %c0_93], %196 {strides = array<i32>} : memref<1x16x8x16xbf16, #tpu.memory_space<vmem>>, vector<1x1x8x16xbf16>,
    %197 = vector.extract_strided_slice %73 {offsets = [8, 0], sizes = [8, 16], strides = [1, 1]} : vector<16x16xf32> to vector<8x16xf32>
    %cst_94 = arith.constant 0.866666674 : f32
    %198 = vector.broadcast %cst_94 : f32 to vector<8x16xf32>
    %199 = arith.mulf %197, %198 : vector<8x16xf32>
    %200 = vector.extract_strided_slice %79 {offsets = [0, 0], sizes = [8, 16], strides = [1, 1]} : vector<16x16xf32> to vector<8x16xf32>
    %cst_95 = arith.constant 0.13333334 : f32
    %201 = vector.broadcast %cst_95 : f32 to vector<8x16xf32>
    %202 = arith.mulf %200, %201 : vector<8x16xf32>
    %203 = arith.addf %199, %202 : vector<8x16xf32>
    %204 = arith.truncf %203 : vector<8x16xf32> to vector<8x16xbf16>
    %c0_96 = arith.constant 0 : index
    %c11 = arith.constant 11 : index
    %c0_97 = arith.constant 0 : index
    %c0_98 = arith.constant 0 : index
    %205 = vector.load %arg6[%c0_96, %c11, %c0_97, %c0_98] : memref<1x16x8x16xbf16, #tpu.memory_space<vmem>>, vector<1x1x8x16xbf16>
    %206 = vector.shape_cast %205 : vector<1x1x8x16xbf16> to vector<8x16xbf16>
    %207 = vector.shape_cast %204 : vector<8x16xbf16> to vector<1x1x8x16xbf16>
    tpu.vector_store %arg6[%c0_96, %c11, %c0_97, %c0_98], %207 {strides = array<i32>} : memref<1x16x8x16xbf16, #tpu.memory_space<vmem>>, vector<1x1x8x16xbf16>,
    %208 = vector.extract_strided_slice %73 {offsets = [8, 0], sizes = [8, 16], strides = [1, 1]} : vector<16x16xf32> to vector<8x16xf32>
    %cst_99 = arith.constant 4.000000e-01 : f32
    %209 = vector.broadcast %cst_99 : f32 to vector<8x16xf32>
    %210 = arith.mulf %208, %209 : vector<8x16xf32>
    %211 = vector.extract_strided_slice %79 {offsets = [0, 0], sizes = [8, 16], strides = [1, 1]} : vector<16x16xf32> to vector<8x16xf32>
    %cst_100 = arith.constant 6.000000e-01 : f32
    %212 = vector.broadcast %cst_100 : f32 to vector<8x16xf32>
    %213 = arith.mulf %211, %212 : vector<8x16xf32>
    %214 = arith.addf %210, %213 : vector<8x16xf32>
    %215 = arith.truncf %214 : vector<8x16xf32> to vector<8x16xbf16>
    %c0_101 = arith.constant 0 : index
    %c12_102 = arith.constant 12 : index
    %c0_103 = arith.constant 0 : index
    %c0_104 = arith.constant 0 : index
    %216 = vector.load %arg6[%c0_101, %c12_102, %c0_103, %c0_104] : memref<1x16x8x16xbf16, #tpu.memory_space<vmem>>, vector<1x1x8x16xbf16>
    %217 = vector.shape_cast %216 : vector<1x1x8x16xbf16> to vector<8x16xbf16>
    %218 = vector.shape_cast %215 : vector<8x16xbf16> to vector<1x1x8x16xbf16>
    tpu.vector_store %arg6[%c0_101, %c12_102, %c0_103, %c0_104], %218 {strides = array<i32>} : memref<1x16x8x16xbf16, #tpu.memory_space<vmem>>, vector<1x1x8x16xbf16>,
    %219 = vector.extract_strided_slice %79 {offsets = [0, 0], sizes = [8, 16], strides = [1, 1]} : vector<16x16xf32> to vector<8x16xf32>
    %cst_105 = arith.constant 0.933333337 : f32
    %220 = vector.broadcast %cst_105 : f32 to vector<8x16xf32>
    %221 = arith.mulf %219, %220 : vector<8x16xf32>
    %222 = vector.extract_strided_slice %79 {offsets = [8, 0], sizes = [8, 16], strides = [1, 1]} : vector<16x16xf32> to vector<8x16xf32>
    %cst_106 = arith.constant 0.0666666701 : f32
    %223 = vector.broadcast %cst_106 : f32 to vector<8x16xf32>
    %224 = arith.mulf %222, %223 : vector<8x16xf32>
    %225 = arith.addf %221, %224 : vector<8x16xf32>
    %226 = arith.truncf %225 : vector<8x16xf32> to vector<8x16xbf16>
    %c0_107 = arith.constant 0 : index
    %c13 = arith.constant 13 : index
    %c0_108 = arith.constant 0 : index
    %c0_109 = arith.constant 0 : index
    %227 = vector.load %arg6[%c0_107, %c13, %c0_108, %c0_109] : memref<1x16x8x16xbf16, #tpu.memory_space<vmem>>, vector<1x1x8x16xbf16>
    %228 = vector.shape_cast %227 : vector<1x1x8x16xbf16> to vector<8x16xbf16>
    %229 = vector.shape_cast %226 : vector<8x16xbf16> to vector<1x1x8x16xbf16>
    tpu.vector_store %arg6[%c0_107, %c13, %c0_108, %c0_109], %229 {strides = array<i32>} : memref<1x16x8x16xbf16, #tpu.memory_space<vmem>>, vector<1x1x8x16xbf16>,
    %230 = vector.extract_strided_slice %79 {offsets = [0, 0], sizes = [8, 16], strides = [1, 1]} : vector<16x16xf32> to vector<8x16xf32>
    %cst_110 = arith.constant 0.466666669 : f32
    %231 = vector.broadcast %cst_110 : f32 to vector<8x16xf32>
    %232 = arith.mulf %230, %231 : vector<8x16xf32>
    %233 = vector.extract_strided_slice %79 {offsets = [8, 0], sizes = [8, 16], strides = [1, 1]} : vector<16x16xf32> to vector<8x16xf32>
    %cst_111 = arith.constant 0.533333361 : f32
    %234 = vector.broadcast %cst_111 : f32 to vector<8x16xf32>
    %235 = arith.mulf %233, %234 : vector<8x16xf32>
    %236 = arith.addf %232, %235 : vector<8x16xf32>
    %237 = arith.truncf %236 : vector<8x16xf32> to vector<8x16xbf16>
    %c0_112 = arith.constant 0 : index
    %c14 = arith.constant 14 : index
    %c0_113 = arith.constant 0 : index
    %c0_114 = arith.constant 0 : index
    %238 = vector.load %arg6[%c0_112, %c14, %c0_113, %c0_114] : memref<1x16x8x16xbf16, #tpu.memory_space<vmem>>, vector<1x1x8x16xbf16>
    %239 = vector.shape_cast %238 : vector<1x1x8x16xbf16> to vector<8x16xbf16>
    %240 = vector.shape_cast %237 : vector<8x16xbf16> to vector<1x1x8x16xbf16>
    tpu.vector_store %arg6[%c0_112, %c14, %c0_113, %c0_114], %240 {strides = array<i32>} : memref<1x16x8x16xbf16, #tpu.memory_space<vmem>>, vector<1x1x8x16xbf16>,
    %241 = vector.extract_strided_slice %79 {offsets = [8, 0], sizes = [8, 16], strides = [1, 1]} : vector<16x16xf32> to vector<8x16xf32>
    %cst_115 = arith.constant 1.000000e+00 : f32
    %242 = vector.broadcast %cst_115 : f32 to vector<8x16xf32>
    %243 = arith.mulf %241, %242 : vector<8x16xf32>
    %244 = arith.truncf %243 : vector<8x16xf32> to vector<8x16xbf16>
    %c0_116 = arith.constant 0 : index
    %c15 = arith.constant 15 : index
    %c0_117 = arith.constant 0 : index
    %c0_118 = arith.constant 0 : index
    %245 = vector.load %arg6[%c0_116, %c15, %c0_117, %c0_118] : memref<1x16x8x16xbf16, #tpu.memory_space<vmem>>, vector<1x1x8x16xbf16>
    %246 = vector.shape_cast %245 : vector<1x1x8x16xbf16> to vector<8x16xbf16>
    %247 = vector.shape_cast %244 : vector<8x16xbf16> to vector<1x1x8x16xbf16>
    tpu.vector_store %arg6[%c0_116, %c15, %c0_117, %c0_118], %247 {strides = array<i32>} : memref<1x16x8x16xbf16, #tpu.memory_space<vmem>>, vector<1x1x8x16xbf16>,
    return
  }
  func.func @transform_0(%arg0: i32) -> (i32, i32, i32) {
    %c0_i32 = arith.constant 0 : i32
    %c0_i32_0 = arith.constant 0 : i32
    %c0_i32_1 = arith.constant 0 : i32
    return %arg0, %c0_i32, %c0_i32_0 : i32, i32, i32
  }
  func.func @transform_1(%arg0: i32) -> (i32, i32) {
    %c0_i32 = arith.constant 0 : i32
    %c0_i32_0 = arith.constant 0 : i32
    %c0_i32_1 = arith.constant 0 : i32
    return %c0_i32, %c0_i32_0 : i32, i32
  }
  func.func @transform_2(%arg0: i32) -> (i32, i32) {
    %c0_i32 = arith.constant 0 : i32
    %c0_i32_0 = arith.constant 0 : i32
    %c0_i32_1 = arith.constant 0 : i32
    return %c0_i32, %c0_i32_0 : i32, i32
  }
  func.func @transform_3(%arg0: i32) -> (i32, i32) {
    %c0_i32 = arith.constant 0 : i32
    %c0_i32_0 = arith.constant 0 : i32
    %c0_i32_1 = arith.constant 0 : i32
    return %c0_i32, %c0_i32_0 : i32, i32
  }
  func.func @transform_4(%arg0: i32) -> (i32, i32, i32) {
    %c0_i32 = arith.constant 0 : i32
    %c0_i32_0 = arith.constant 0 : i32
    %c0_i32_1 = arith.constant 0 : i32
    %c0_i32_2 = arith.constant 0 : i32
    return %c0_i32, %c0_i32_0, %c0_i32_1 : i32, i32, i32
  }
  func.func @transform_5(%arg0: i32) -> (i32, i32, i32, i32) {
    %c0_i32 = arith.constant 0 : i32
    %c0_i32_0 = arith.constant 0 : i32
    %c0_i32_1 = arith.constant 0 : i32
    %c0_i32_2 = arith.constant 0 : i32
    return %arg0, %c0_i32, %c0_i32_0, %c0_i32_1 : i32, i32, i32, i32
  }
}

module attributes {stable_mosaic.version = 11 : i64} {
  func.func @_conv_in_tanh_kernel(%arg0: i32, %arg1: memref<1x72x256xbf16, #tpu.memory_space<vmem>>, %arg2: memref<3x72xbf16, #tpu.memory_space<vmem>>, %arg3: memref<3x1xf32, #tpu.memory_space<vmem>>, %arg4: memref<3x1xf32, #tpu.memory_space<vmem>>, %arg5: memref<1x3x256xf32, #tpu.memory_space<vmem>>) attributes {dimension_semantics = [#tpu.dimension_semantics<parallel>], iteration_bounds = array<i64: 2>, scalar_prefetch = 0 : i64, scratch_operands = 0 : i64, tpu.core_type = #tpu.core_type<tc>, window_params = [{transform_indices = @transform_0, window_bounds = array<i64: 1, 72, 256>}, {pipeline_mode = #tpu.pipeline_mode<synchronous>, transform_indices = @transform_1, window_bounds = array<i64: 3, 72>}, {pipeline_mode = #tpu.pipeline_mode<synchronous>, transform_indices = @transform_2, window_bounds = array<i64: 3, 1>}, {pipeline_mode = #tpu.pipeline_mode<synchronous>, transform_indices = @transform_3, window_bounds = array<i64: 3, 1>}, {transform_indices = @transform_4, window_bounds = array<i64: 1, 3, 256>}]} {
    %c0 = arith.constant 0 : index
    %c0_0 = arith.constant 0 : index
    %0 = vector.load %arg2[%c0, %c0_0] : memref<3x72xbf16, #tpu.memory_space<vmem>>, vector<3x72xbf16>
    %c0_1 = arith.constant 0 : index
    %c0_2 = arith.constant 0 : index
    %c0_3 = arith.constant 0 : index
    %1 = vector.load %arg1[%c0_1, %c0_2, %c0_3] : memref<1x72x256xbf16, #tpu.memory_space<vmem>>, vector<1x72x256xbf16>
    %2 = vector.shape_cast %1 : vector<1x72x256xbf16> to vector<72x256xbf16>
    %cst = arith.constant dense<0.000000e+00> : vector<3x256xf32>
    %3 = tpu.matmul %0, %2, %cst {dimension_numbers = #tpu.dot_dimension_numbers<[1], [0], [0], [1], [0, 0, 1, 1], [], []>} : vector<3x72xbf16>, vector<72x256xbf16>, vector<3x256xf32> -> vector<3x256xf32>
    %cst_4 = arith.constant dense<0.000000e+00> : vector<3xf32>
    %4 = vector.multi_reduction <add>, %3, %cst_4 [1] : vector<3x256xf32> to vector<3xf32>
    %5 = vector.shape_cast %4 : vector<3xf32> to vector<3x1xf32>
    %6 = arith.mulf %3, %3 : vector<3x256xf32>
    %cst_5 = arith.constant dense<0.000000e+00> : vector<3xf32>
    %7 = vector.multi_reduction <add>, %6, %cst_5 [1] : vector<3x256xf32> to vector<3xf32>
    %8 = vector.shape_cast %7 : vector<3xf32> to vector<3x1xf32>
    %cst_6 = arith.constant 3.906250e-03 : f32
    %9 = vector.broadcast %cst_6 : f32 to vector<3x1xf32>
    %10 = arith.mulf %5, %9 : vector<3x1xf32>
    %cst_7 = arith.constant 3.906250e-03 : f32
    %11 = vector.broadcast %cst_7 : f32 to vector<3x1xf32>
    %12 = arith.mulf %8, %11 : vector<3x1xf32>
    %13 = arith.mulf %10, %10 : vector<3x1xf32>
    %14 = arith.subf %12, %13 : vector<3x1xf32>
    %cst_8 = arith.constant 0.000000e+00 : f32
    %15 = vector.broadcast %cst_8 : f32 to vector<3x1xf32>
    %16 = arith.maximumf %14, %15 : vector<3x1xf32>
    %17 = vector.broadcast %10 : vector<3x1xf32> to vector<3x256xf32>
    %18 = arith.subf %3, %17 : vector<3x256xf32>
    %cst_9 = arith.constant 9.99999974E-6 : f32
    %19 = vector.broadcast %cst_9 : f32 to vector<3x1xf32>
    %20 = arith.addf %16, %19 : vector<3x1xf32>
    %21 = math.rsqrt %20 : vector<3x1xf32>
    %c0_10 = arith.constant 0 : index
    %c0_11 = arith.constant 0 : index
    %22 = vector.load %arg3[%c0_10, %c0_11] : memref<3x1xf32, #tpu.memory_space<vmem>>, vector<3x1xf32>
    %23 = arith.mulf %21, %22 : vector<3x1xf32>
    %24 = vector.broadcast %23 : vector<3x1xf32> to vector<3x256xf32>
    %25 = arith.mulf %18, %24 : vector<3x256xf32>
    %c0_12 = arith.constant 0 : index
    %c0_13 = arith.constant 0 : index
    %26 = vector.load %arg4[%c0_12, %c0_13] : memref<3x1xf32, #tpu.memory_space<vmem>>, vector<3x1xf32>
    %27 = vector.broadcast %26 : vector<3x1xf32> to vector<3x256xf32>
    %28 = arith.addf %25, %27 : vector<3x256xf32>
    %29 = math.tanh %28 : vector<3x256xf32>
    %c0_14 = arith.constant 0 : index
    %c0_15 = arith.constant 0 : index
    %c0_16 = arith.constant 0 : index
    %30 = vector.load %arg5[%c0_14, %c0_15, %c0_16] : memref<1x3x256xf32, #tpu.memory_space<vmem>>, vector<1x3x256xf32>
    %31 = vector.shape_cast %30 : vector<1x3x256xf32> to vector<3x256xf32>
    %32 = vector.shape_cast %29 : vector<3x256xf32> to vector<1x3x256xf32>
    tpu.vector_store %arg5[%c0_14, %c0_15, %c0_16], %32 {strides = array<i32>} : memref<1x3x256xf32, #tpu.memory_space<vmem>>, vector<1x3x256xf32>,
    return
  }
  func.func @transform_0(%arg0: i32) -> (i32, i32, i32) {
    %c0_i32 = arith.constant 0 : i32
    %c0_i32_0 = arith.constant 0 : i32
    %c0_i32_1 = arith.constant 0 : i32
    return %arg0, %c0_i32, %c0_i32_0 : i32, i32, i32
  }
  func.func @transform_1(%arg0: i32) -> (i32, i32) {
    %c0_i32 = arith.constant 0 : i32
    %c0_i32_0 = arith.constant 0 : i32
    %c0_i32_1 = arith.constant 0 : i32
    return %c0_i32, %c0_i32_0 : i32, i32
  }
  func.func @transform_2(%arg0: i32) -> (i32, i32) {
    %c0_i32 = arith.constant 0 : i32
    %c0_i32_0 = arith.constant 0 : i32
    %c0_i32_1 = arith.constant 0 : i32
    return %c0_i32, %c0_i32_0 : i32, i32
  }
  func.func @transform_3(%arg0: i32) -> (i32, i32) {
    %c0_i32 = arith.constant 0 : i32
    %c0_i32_0 = arith.constant 0 : i32
    %c0_i32_1 = arith.constant 0 : i32
    return %c0_i32, %c0_i32_0 : i32, i32
  }
  func.func @transform_4(%arg0: i32) -> (i32, i32, i32) {
    %c0_i32 = arith.constant 0 : i32
    %c0_i32_0 = arith.constant 0 : i32
    %c0_i32_1 = arith.constant 0 : i32
    return %arg0, %c0_i32, %c0_i32_0 : i32, i32, i32
  }
}

</mosaic_0001>

<llo_original>
// kernel: _lambda_.3
$region0: #{_lambda_.3}
  #allocation0 [shape = 'u32[]', space=smem, size = 0x4, offset = 0x4, fixed_abs, tag = 'smem constant byte address 0x4 - core index']
  #allocation1 [shape = 'u32[144,128]{1,0:T(1,128)}', space=vmem, size = 0x12000, scoped, tag = 'internal scratch']
  #allocation2 [shape = 'bf16[64,1]{1,0:T(16,128)(2,1)}', space=vmem, size = 0x4000, scoped, tag = 'scratch operand']
  %s0 = inlined_call_operand.vmem [shape: bf16[2,128,1], index: 0, kind: input, shape index: {}]
  %s1 = inlined_call_operand.vmem [shape: bf16[64,128], index: 1, kind: input, shape index: {}]
  %s2 = inlined_call_operand.vmem [shape: f32[16,1], index: 2, kind: input, shape index: {}]
  %s3 = inlined_call_operand.vmem [shape: f32[16,1], index: 3, kind: input, shape index: {}]
  %s4 = inlined_call_operand.vmem [shape: bf16[2,1,4], index: 4, kind: input, shape index: {}]
  %s5 = inlined_call_operand.vmem [shape: bf16[2,4,16,4], index: 5, kind: output, shape index: {}]
  %s6 = sld [smem:[#allocation0]]
  $region53: #{_lambda_.3} parent=0
    _
  %s8 = ssub.s32 1, %s6
  %s9 = scalar_select 0, %s8, %s6
  loop: start=0, step=1, limit=4
  $region2: #{_lambda_.3} parent=0 // loop_pre_header
    _
  $region3: #{_lambda_.3} parent=0 // loop_header
    %s11 = sphi 0, %s15
    %p12 = scmp.ge.s32.totalorder %s11, 4
    %s21 = sphi 0, %s23
    %s24 = sphi 0, %s21
    %s25 = sphi 0, %s24
    %s41 = sphi 0, %s25
    %s45 = sphi 0, %s45
    %s47 = sphi 0, %s45
    %s48 = sphi 0, %s47
    %s62 = sphi 0, %s48
    %s66 = sphi 0, %s66
    %s68 = sphi 0, %s66
    %s69 = sphi 0, %s68
    %s83 = sphi 0, %s69
    %s87 = sphi 0, %s87
    %s89 = sphi 0, %s87
    %s90 = sphi 0, %s89
    %s104 = sphi 0, %s90
    %s108 = sphi 0, %s108
    %s110 = sphi 0, %s108
    %s111 = sphi 0, %s110
    %s125 = sphi 0, %s111
    %s131 = sphi 0, %s133
    %s134 = sphi 0, %s131
    %s135 = sphi 0, %s134
    %s151 = sphi 0, %s135
  $region4: #{_lambda_.3} parent=0 // loop_header_branch
    %14 = sbr.rel (%p12) target = $region8
  $region5: #{_lambda_.3} parent=0 // loop_body
    %s16 = ssub.s32 %s11, 1
    %s17 = ssub.s32 %s11, 2
    %s18 = sadd.s32 %s11, 1
    %s19 = ssub.s32 %s11, %s18
    %p20 = scmp.eq.s32.totalorder %s19, 0
    %s22 = sadd.s32 %s21, 1
    %s23 = scalar_select %p20, %s21, %s22
    %p26 = pneg %p20
    %p27 = scmp.eq.s32.totalorder %s11, 1
    %p28 = por %p26, %p27
    %p29 = scmp.ne.s32.totalorder %s21, %s24
    %p30 = scmp.eq.s32.totalorder %s11, 0
    %p31 = por %p29, %p30
    %p32 = scmp.ne.s32.totalorder %s21, %s24
    %p33 = scmp.eq.s32.totalorder %s16, 1
    %p34 = por %p32, %p33
    %p35 = scmp.ne.s32.totalorder %s24, %s25
    %p36 = scmp.eq.s32.totalorder %s16, 0
    %p37 = por %p35, %p36
    %p38 = scmp.ne.s32.totalorder %s24, %s25
    %p39 = scmp.eq.s32.totalorder %s17, 1
    %p40 = por %p38, %p39
    %p42 = scmp.ne.s32.totalorder %s25, %s41
    %p43 = scmp.eq.s32.totalorder %s17, 0
    %p44 = por %p42, %p43
    %s46 = sadd.s32 %s45, 1
    %p49 = scmp.eq.s32.totalorder %s11, 1
    %p50 = scmp.ne.s32.totalorder %s45, %s47
    %p51 = scmp.eq.s32.totalorder %s11, 0
    %p52 = por %p50, %p51
    %p53 = scmp.ne.s32.totalorder %s45, %s47
    %p54 = scmp.eq.s32.totalorder %s16, 1
    %p55 = por %p53, %p54
    %p56 = scmp.ne.s32.totalorder %s47, %s48
    %p57 = scmp.eq.s32.totalorder %s16, 0
    %p58 = por %p56, %p57
    %p59 = scmp.ne.s32.totalorder %s47, %s48
    %p60 = scmp.eq.s32.totalorder %s17, 1
    %p61 = por %p59, %p60
    %p63 = scmp.ne.s32.totalorder %s48, %s62
    %p64 = scmp.eq.s32.totalorder %s17, 0
    %p65 = por %p63, %p64
    %s67 = sadd.s32 %s66, 1
    %p70 = scmp.eq.s32.totalorder %s11, 1
    %p71 = scmp.ne.s32.totalorder %s66, %s68
    %p72 = scmp.eq.s32.totalorder %s11, 0
    %p73 = por %p71, %p72
    %p74 = scmp.ne.s32.totalorder %s66, %s68
    %p75 = scmp.eq.s32.totalorder %s16, 1
    %p76 = por %p74, %p75
    %p77 = scmp.ne.s32.totalorder %s68, %s69
    %p78 = scmp.eq.s32.totalorder %s16, 0
    %p79 = por %p77, %p78
    %p80 = scmp.ne.s32.totalorder %s68, %s69
    %p81 = scmp.eq.s32.totalorder %s17, 1
    %p82 = por %p80, %p81
    %p84 = scmp.ne.s32.totalorder %s69, %s83
    %p85 = scmp.eq.s32.totalorder %s17, 0
    %p86 = por %p84, %p85
    %s88 = sadd.s32 %s87, 1
    %p91 = scmp.eq.s32.totalorder %s11, 1
    %p92 = scmp.ne.s32.totalorder %s87, %s89
    %p93 = scmp.eq.s32.totalorder %s11, 0
    %p94 = por %p92, %p93
    %p95 = scmp.ne.s32.totalorder %s87, %s89
    %p96 = scmp.eq.s32.totalorder %s16, 1
    %p97 = por %p95, %p96
    %p98 = scmp.ne.s32.totalorder %s89, %s90
    %p99 = scmp.eq.s32.totalorder %s16, 0
    %p100 = por %p98, %p99
    %p101 = scmp.ne.s32.totalorder %s89, %s90
    %p102 = scmp.eq.s32.totalorder %s17, 1
    %p103 = por %p101, %p102
    %p105 = scmp.ne.s32.totalorder %s90, %s104
    %p106 = scmp.eq.s32.totalorder %s17, 0
    %p107 = por %p105, %p106
    %s109 = sadd.s32 %s108, 1
    %p112 = scmp.eq.s32.totalorder %s11, 1
    %p113 = scmp.ne.s32.totalorder %s108, %s110
    %p114 = scmp.eq.s32.totalorder %s11, 0
    %p115 = por %p113, %p114
    %p116 = scmp.ne.s32.totalorder %s108, %s110
    %p117 = scmp.eq.s32.totalorder %s16, 1
    %p118 = por %p116, %p117
    %p119 = scmp.ne.s32.totalorder %s110, %s111
    %p120 = scmp.eq.s32.totalorder %s16, 0
    %p121 = por %p119, %p120
    %p122 = scmp.ne.s32.totalorder %s110, %s111
    %p123 = scmp.eq.s32.totalorder %s17, 1
    %p124 = por %p122, %p123
    %p126 = scmp.ne.s32.totalorder %s111, %s125
    %p127 = scmp.eq.s32.totalorder %s17, 0
    %p128 = por %p126, %p127
    %s129 = ssub.s32 %s11, %s18
    %p130 = scmp.eq.s32.totalorder %s129, 0
    %s132 = sadd.s32 %s131, 1
    %s133 = scalar_select %p130, %s131, %s132
    %p136 = pneg %p130
    %p137 = scmp.eq.s32.totalorder %s11, 1
    %p138 = por %p136, %p137
    %p139 = scmp.ne.s32.totalorder %s131, %s134
    %p140 = scmp.eq.s32.totalorder %s11, 0
    %p141 = por %p139, %p140
    %p142 = scmp.ne.s32.totalorder %s131, %s134
    %p143 = scmp.eq.s32.totalorder %s16, 1
    %p144 = por %p142, %p143
    %p145 = scmp.ne.s32.totalorder %s134, %s135
    %p146 = scmp.eq.s32.totalorder %s16, 0
    %p147 = por %p145, %p146
    %p148 = scmp.ne.s32.totalorder %s134, %s135
    %p149 = scmp.eq.s32.totalorder %s17, 1
    %p150 = por %p148, %p149
    %p152 = scmp.ne.s32.totalorder %s135, %s151
    %p153 = scmp.eq.s32.totalorder %s17, 0
    %p154 = por %p152, %p153
    %p155 = scmp.le.s32.totalorder 1, %s11
    %p156 = scmp.lt.s32.totalorder %s11, 3
    %p157 = pnand %p155, %p156
    %p158 = pneg %p157
    // Predicated region
    $region9: #{_lambda_.3} parent=5 // pred_check
      _
    $region10: #{_lambda_.3} parent=5 // pred_check_branch
      %160 = sbr.rel (%p157) target = $region12
    $region11: #{_lambda_.3} parent=5 // pred_region
      %s161 = ssub.s32 %s11, 1
      // Predicated region
      $region13: #{_lambda_.3} parent=11 // pred_check
        %p162 = pneg %p58
      $region14: #{_lambda_.3} parent=11 // pred_check_branch
        %164 = sbr.rel (%p162) target = $region16
      $region15: #{_lambda_.3} parent=11 // pred_region
        _
      $region16: #{_lambda_.3} parent=11 // pred_fallthru
        _
      // Predicated region
      $region17: #{_lambda_.3} parent=11 // pred_check
        %p165 = pneg %p79
      $region18: #{_lambda_.3} parent=11 // pred_check_branch
        %167 = sbr.rel (%p165) target = $region20
      $region19: #{_lambda_.3} parent=11 // pred_region
        _
      $region20: #{_lambda_.3} parent=11 // pred_fallthru
        _
      // Predicated region
      $region21: #{_lambda_.3} parent=11 // pred_check
        %p168 = pneg %p100
      $region22: #{_lambda_.3} parent=11 // pred_check_branch
        %170 = sbr.rel (%p168) target = $region24
      $region23: #{_lambda_.3} parent=11 // pred_region
        _
      $region24: #{_lambda_.3} parent=11 // pred_fallthru
        _
      // Predicated region
      $region25: #{_lambda_.3} parent=11 // pred_check
        %p171 = pneg %p121
      $region26: #{_lambda_.3} parent=11 // pred_check_branch
        %173 = sbr.rel (%p171) target = $region28
      $region27: #{_lambda_.3} parent=11 // pred_region
        _
      $region28: #{_lambda_.3} parent=11 // pred_fallthru
        _
    $region12: #{_lambda_.3} parent=5 // pred_fallthru
      _
    %p174 = scmp.lt.s32.totalorder %s11, 2
    // Predicated region
    $region29: #{_lambda_.3} parent=5 // pred_check
      %p175 = pneg %p174
    $region30: #{_lambda_.3} parent=5 // pred_check_branch
      %177 = sbr.rel (%p175) target = $region32
    $region31: #{_lambda_.3} parent=5 // pred_region
      // Predicated region
      $region33: #{_lambda_.3} parent=31 // pred_check
        %p178 = pneg %p31
      $region34: #{_lambda_.3} parent=31 // pred_check_branch
        %180 = sbr.rel (%p178) target = $region36
      $region35: #{_lambda_.3} parent=31 // pred_region
        %p181 = scmp.lt.s32.totalorder %s11, 1
        %s182 = scalar_select %p181, %s11, 1
        %s183 = smul.addr %s182, 16
        %s184 = smul.addr %s183, 4
        %s185 = scalar_lea.vmem %s0, %s184
      $region36: #{_lambda_.3} parent=31 // pred_fallthru
        _
    $region32: #{_lambda_.3} parent=5 // pred_fallthru
      _
    %p186 = scmp.le.s32.totalorder 1, %s11
    %p187 = scmp.lt.s32.totalorder %s11, 3
    %p188 = pnand %p186, %p187
    %p189 = pneg %p188
    // Predicated region
    $region37: #{_lambda_.3} parent=5 // pred_check
      _
    $region38: #{_lambda_.3} parent=5 // pred_check_branch
      %191 = sbr.rel (%p188) target = $region40
    $region39: #{_lambda_.3} parent=5 // pred_region
      %s192 = ssub.s32 %s11, 1
      %p193 = scmp.lt.s32.totalorder %s16, 1
      %s194 = scalar_select %p193, %s16, 1
      %s195 = smul.addr %s194, 16
      %s196 = smul.addr %s195, 4
      %s197 = scalar_lea.vmem %s0, %s196
      %p198 = pneg %p37
      %p199 = pneg %p34
      %p200 = pneg %p58
      %p201 = pneg %p55
      %p202 = pneg %p79
      %p203 = pneg %p76
      %p204 = pneg %p100
      %p205 = pneg %p97
      %p206 = pneg %p121
      %p207 = pneg %p118
      %p208 = pneg %p147
      %p209 = pneg %p144
      %p210 = scmp.lt.s32.totalorder %s16, 1
      %s211 = scalar_select %p210, %s16, 1
      %s212 = smul.addr %s211, 8
      %s213 = smul.addr %s212, 4
      %s214 = scalar_lea.vmem %s5, %s213
      %p215 = scmp.lt.s32.totalorder %s16, 1
      %s216 = scalar_select %p215, %s16, 1
      %s217 = smul.addr %s216, 16
      %s218 = smul.addr %s217, 4
      %s219 = scalar_lea.vmem %s0, %s218
      %p220 = scmp.lt.s32.totalorder %s16, 1
      %s221 = scalar_select %p220, %s16, 1
      %s222 = smul.addr %s221, 8
      %s223 = smul.addr %s222, 4
      %s224 = scalar_lea.vmem %s5, %s223
      %v226 = vld [vmem:[%s1] sm:$0xf]
      %v227 = vld [vmem:[%s1 + $0x4] sm:$0xf]
      %v228 = vld [vmem:[%s1 + $0x8] sm:$0xf]
      %v229 = vld [vmem:[%s1 + $0xc] sm:$0xf]
      %v230 = vld [vmem:[%s1 + $0x10] sm:$0xf]
      %v231 = vld [vmem:[%s1 + $0x14] sm:$0xf]
      %v232 = vld [vmem:[%s1 + $0x18] sm:$0xf]
      %v233 = vld [vmem:[%s1 + $0x1c] sm:$0xf]
      %v234 = vld [vmem:[%s219] sm:$0xf]
      %v235 = vld [vmem:[%s219 + $0x4] sm:$0xf]
      %v236 = vld [vmem:[%s219 + $0x8] sm:$0xf]
      %v237 = vld [vmem:[%s219 + $0xc] sm:$0xf]
      %v238 = vld [vmem:[%s219 + $0x10] sm:$0xf]
      %v239 = vld [vmem:[%s219 + $0x14] sm:$0xf]
      %v240 = vld [vmem:[%s219 + $0x18] sm:$0xf]
      %v241 = vld [vmem:[%s219 + $0x1c] sm:$0xf]
      %v242 = vld [vmem:[%s219 + $0x20] sm:$0xf]
      %v243 = vld [vmem:[%s219 + $0x24] sm:$0xf]
      %v244 = vld [vmem:[%s219 + $0x28] sm:$0xf]
      %v245 = vld [vmem:[%s219 + $0x2c] sm:$0xf]
      %v246 = vld [vmem:[%s219 + $0x30] sm:$0xf]
      %v247 = vld [vmem:[%s219 + $0x34] sm:$0xf]
      %v248 = vld [vmem:[%s219 + $0x38] sm:$0xf]
      %v249 = vld [vmem:[%s219 + $0x3c] sm:$0xf]
      %v258 = vunpack.c.l.b16 %v226
      %v259 = vunpack.c.l.b16 %v227
      %v260 = vunpack.c.l.b16 %v228
      %v261 = vunpack.c.l.b16 %v229
      %v262 = vunpack.c.l.b16 %v230
      %v263 = vunpack.c.l.b16 %v231
      %v264 = vunpack.c.l.b16 %v232
      %v265 = vunpack.c.l.b16 %v233
      %v266 = vpack.c.b16 %v259, %v258
      %v267 = vpack.c.b16 %v261, %v260
      %v268 = vpack.c.b16 %v263, %v262
      %v269 = vpack.c.b16 %v265, %v264
      %v290 = vunpack.c.l.b16 %v234
      %v291 = vunpack.c.l.b16 %v235
      %v292 = vunpack.c.l.b16 %v236
      %v293 = vunpack.c.l.b16 %v237
      %v294 = vunpack.c.l.b16 %v238
      %v295 = vunpack.c.l.b16 %v239
      %v296 = vunpack.c.l.b16 %v240
      %v297 = vunpack.c.l.b16 %v241
      %v298 = vunpack.c.l.b16 %v242
      %v299 = vunpack.c.l.b16 %v243
      %v300 = vunpack.c.l.b16 %v244
      %v301 = vunpack.c.l.b16 %v245
      %v302 = vunpack.c.l.b16 %v246
      %v303 = vunpack.c.l.b16 %v247
      %v304 = vunpack.c.l.b16 %v248
      %v305 = vunpack.c.l.b16 %v249
      %v306 = vpack.c.b16 %v291, %v290
      %v307 = vpack.c.b16 %v293, %v292
      %v308 = vpack.c.b16 %v295, %v294
      %v309 = vpack.c.b16 %v297, %v296
      %v310 = vpack.c.b16 %v299, %v298
      %v311 = vpack.c.b16 %v301, %v300
      %v312 = vpack.c.b16 %v303, %v302
      %v313 = vpack.c.b16 %v305, %v304
      %322 = vmatprep.subr.bf16.mxu0 0
      %323 = vmatpush1.bf16.msra.mxu0 %v306
      %324 = vmatprep.subr.bf16.mxu0 0
      %325 = vmatpush1.bf16.msra.mxu0 %v307
      %326 = vmatprep.subr.bf16.mxu0 0
      %327 = vmatpush1.bf16.msra.mxu0 %v308
      %328 = vmatprep.subr.bf16.mxu0 0
      %329 = vmatpush1.bf16.msra.mxu0 %v309
      %330 = vmatprep.subr.bf16.mxu0 0
      %331 = vmatpush1.bf16.msra.mxu0 %v310
      %332 = vmatprep.subr.bf16.mxu0 0
      %333 = vmatpush1.bf16.msra.mxu0 %v311
      %334 = vmatprep.subr.bf16.mxu0 0
      %335 = vmatpush1.bf16.msra.mxu0 %v312
      %336 = vmatprep.subr.bf16.mxu0 0
      %337 = vmatpush1.bf16.msra.mxu0 %v313
      %338 = vmatprep.subr.bf16.mxu0 0
      %339 = vmatpush1.bf16.msra.mxu0 0
      %340 = vmatprep.subr.bf16.mxu0 0
      %341 = vmatpush1.bf16.msra.mxu0 0
      %342 = vmatprep.subr.bf16.mxu0 0
      %343 = vmatpush1.bf16.msra.mxu0 0
      %344 = vmatprep.subr.bf16.mxu0 0
      %345 = vmatpush1.bf16.msra.mxu0 0
      %346 = vmatprep.subr.bf16.mxu0 0
      %347 = vmatpush1.bf16.msra.mxu0 0
      %348 = vmatprep.subr.bf16.mxu0 0
      %349 = vmatpush1.bf16.msra.mxu0 0
      %350 = vmatprep.subr.bf16.mxu0 0
      %351 = vmatpush1.bf16.msra.mxu0 0
      %352 = vmatprep.subr.bf16.mxu0 0
      %353 = vmatpush1.bf16.msra.mxu0 0
      %354 = vmatprep.mubr.bf16.mxu0 0
      %355 = vmatmul.mubr.bf16.gmra.mrb[0].mxu0 %v266
      %v356 = vpop.f32.mrb[0].mxu0
      %v357 = vadd.f32 0.0, %v356
      %v358 = vpop.f32.mrb[0].mxu0
      %v359 = vpop.f32.mrb[0].mxu0
      %v360 = vadd.f32 0.0, %v359
      %v361 = vpop.f32.mrb[0].mxu0
      %362 = vmatprep.mubr.bf16.mxu0 0
      %363 = vmatmul.mubr.bf16.gmra.mrb[0].mxu0 %v267
      %v364 = vpop.f32.mrb[0].mxu0
      %v365 = vadd.f32 0.0, %v364
      %v366 = vpop.f32.mrb[0].mxu0
      %v367 = vpop.f32.mrb[0].mxu0
      %v368 = vadd.f32 0.0, %v367
      %v369 = vpop.f32.mrb[0].mxu0
      %370 = vmatprep.mubr.bf16.mxu0 0
      %371 = vmatmul.mubr.bf16.gmra.mrb[0].mxu0 %v268
      %v372 = vpop.f32.mrb[0].mxu0
      %v373 = vadd.f32 0.0, %v372
      %v374 = vpop.f32.mrb[0].mxu0
      %v375 = vpop.f32.mrb[0].mxu0
      %v376 = vadd.f32 0.0, %v375
      %v377 = vpop.f32.mrb[0].mxu0
      %378 = vmatprep.mubr.bf16.mxu0 0
      %379 = vmatmul.mubr.bf16.gmra.mrb[0].mxu0 %v269
      %v380 = vpop.f32.mrb[0].mxu0
      %v381 = vadd.f32 0.0, %v380
      %v382 = vpop.f32.mrb[0].mxu0
      %v383 = vpop.f32.mrb[0].mxu0
      %v384 = vadd.f32 0.0, %v383
      %v385 = vpop.f32.mrb[0].mxu0
      %386 = vdwg.mxu0
      %v387 = vadd.f32 %v357, 0.0
      %v388 = vadd.f32 %v360, 0.0
      %v389 = vadd.f32 %v365, 0.0
      %v390 = vadd.f32 %v368, 0.0
      %v391 = vadd.f32 %v373, 0.0
      %v392 = vadd.f32 %v376, 0.0
      %v393 = vadd.f32 %v381, 0.0
      %v394 = vadd.f32 %v384, 0.0
      %v395 = vmul.f32 %v357, %v357
      %v396 = vmul.f32 %v360, %v360
      %v397 = vmul.f32 %v365, %v365
      %v398 = vmul.f32 %v368, %v368
      %v399 = vmul.f32 %v373, %v373
      %v400 = vmul.f32 %v376, %v376
      %v401 = vmul.f32 %v381, %v381
      %v402 = vmul.f32 %v384, %v384
      %v403 = vadd.f32 %v395, 0.0
      %v404 = vadd.f32 %v396, 0.0
      %v405 = vadd.f32 %v397, 0.0
      %v406 = vadd.f32 %v398, 0.0
      %v407 = vadd.f32 %v399, 0.0
      %v408 = vadd.f32 %v400, 0.0
      %v409 = vadd.f32 %v401, 0.0
      %v410 = vadd.f32 %v402, 0.0
      %v411 = vadd.f32 %v387, %v389
      %v412 = vadd.f32 %v388, %v390
      %v413 = vadd.f32 %v411, %v391
      %v414 = vadd.f32 %v412, %v392
      %v415 = vadd.f32 %v413, %v393
      %v416 = vadd.f32 %v414, %v394
      %v417 = vadd.f32 %v403, %v405
      %v418 = vadd.f32 %v404, %v406
      %v419 = vadd.f32 %v417, %v407
      %v420 = vadd.f32 %v418, %v408
      %v421 = vadd.f32 %v419, %v409
      %v422 = vadd.f32 %v420, %v410
      %v423 = vmul.f32 %v415, 0.25
      %v424 = vmul.f32 %v416, 0.25
      %v425 = vmul.f32 %v421, 0.25
      %v426 = vmul.f32 %v422, 0.25
      %v427 = vmul.f32 %v423, %v423
      %v428 = vmul.f32 %v424, %v424
      %v429 = vsub.f32 %v425, %v427
      %v430 = vsub.f32 %v426, %v428
      %v431 = vmax.f32 %v429, 0.0
      %v432 = vmax.f32 %v430, 0.0
      %v433 = vadd.f32 %v431, 1e-05
      %v434 = vadd.f32 %v432, 1e-05
      %v435 = vrsqrt.pop %v433
      %v436 = vrsqrt.pop %v434
      %v437 = vld [vmem:[%s2] sm:$0xff]
      %v438 = vld [vmem:[%s2 + $0x8] sm:$0xff]
      %v439 = vmul.f32 %v435, %v437
      %v440 = vmul.f32 %v436, %v438
      %v441 = vld [vmem:[%s3] sm:$0xff]
      %v442 = vld [vmem:[%s3 + $0x8] sm:$0xff]
      %v443 = vmul.f32 %v423, %v439
      %v444 = vmul.f32 %v424, %v440
      %v445 = vsub.f32 %v441, %v443
      %v446 = vsub.f32 %v442, %v444
      %v447 = vmul.f32 %v357, %v439
      %v448 = vmul.f32 %v360, %v440
      %v449 = vmul.f32 %v365, %v439
      %v450 = vmul.f32 %v368, %v440
      %v451 = vmul.f32 %v373, %v439
      %v452 = vmul.f32 %v376, %v440
      %v453 = vmul.f32 %v381, %v439
      %v454 = vmul.f32 %v384, %v440
      %v455 = vadd.f32 %v447, %v445
      %v456 = vadd.f32 %v448, %v446
      %v457 = vadd.f32 %v449, %v445
      %v458 = vadd.f32 %v450, %v446
      %v459 = vadd.f32 %v451, %v445
      %v460 = vadd.f32 %v452, %v446
      %v461 = vadd.f32 %v453, %v445
      %v462 = vadd.f32 %v454, %v446
      %vm463 = vcmp.ge.f32.partialorder %v455, 0.0
      %vm464 = vcmp.ge.f32.partialorder %v456, 0.0
      %vm465 = vcmp.ge.f32.partialorder %v457, 0.0
      %vm466 = vcmp.ge.f32.partialorder %v458, 0.0
      %vm467 = vcmp.ge.f32.partialorder %v459, 0.0
      %vm468 = vcmp.ge.f32.partialorder %v460, 0.0
      %vm469 = vcmp.ge.f32.partialorder %v461, 0.0
      %vm470 = vcmp.ge.f32.partialorder %v462, 0.0
      %v471 = vmul.f32 %v455, 0.01
      %v472 = vmul.f32 %v456, 0.01
      %v473 = vmul.f32 %v457, 0.01
      %v474 = vmul.f32 %v458, 0.01
      %v475 = vmul.f32 %v459, 0.01
      %v476 = vmul.f32 %v460, 0.01
      %v477 = vmul.f32 %v461, 0.01
      %v478 = vmul.f32 %v462, 0.01
      %v479 = vsel %vm463, %v455, %v471
      %v480 = vsel %vm464, %v456, %v472
      %v481 = vsel %vm465, %v457, %v473
      %v482 = vsel %vm466, %v458, %v474
      %v483 = vsel %vm467, %v459, %v475
      %v484 = vsel %vm468, %v460, %v476
      %v485 = vsel %vm469, %v461, %v477
      %v486 = vsel %vm470, %v462, %v478
      %v487 = vpack.c.bf16 %v480, %v479
      %v488 = vpack.c.bf16 %v482, %v481
      %v489 = vpack.c.bf16 %v484, %v483
      %v490 = vpack.c.bf16 %v486, %v485
      %vm491 = vcmask 7168
      %492 = vst.msk [vmem:[#allocation2] sm:$0xff] %vm491, %v487
      %493 = vst.msk [vmem:[#allocation2 + $0x8] sm:$0xff] %vm491, %v488
      %494 = vst.msk [vmem:[#allocation2 + $0x10] sm:$0xff] %vm491, %v489
      %495 = vst.msk [vmem:[#allocation2 + $0x18] sm:$0xff] %vm491, %v490
      %v496 = vld [vmem:[%s4] sm:$0x1]
      %s497 = scalar_lea.vmem %s4, 1
      %v498 = vld [vmem:[%s497] sm:$0x1]
      %v499 = vld [vmem:[#allocation2] sm:$0xff]
      %v500 = vld [vmem:[#allocation2 + $0x8] sm:$0xff]
      %v501 = vld [vmem:[#allocation2 + $0x10] sm:$0xff]
      %v502 = vld [vmem:[#allocation2 + $0x18] sm:$0xff]
      %v503 = vunpack.c.l.bf16 %v499
      %v504 = vunpack.c.h.bf16 %v499
      %v505 = vunpack.c.l.bf16 %v500
      %v506 = vunpack.c.h.bf16 %v500
      %v507 = vunpack.c.l.bf16 %v501
      %v508 = vunpack.c.h.bf16 %v501
      %v509 = vunpack.c.l.bf16 %v502
      %v510 = vunpack.c.h.bf16 %v502
      %v511 = vunpack.c.l.bf16 %v496
      %513 = vset.pattern.permute.xlu0 0
      %514 = vperm.xlu0 %513, %v503
      %v515 = vpop.permute.xlu0 %514
      %518 = vset.pattern.permute.xlu0 0
      %519 = vperm.xlu0 %518, %v504
      %v520 = vpop.permute.xlu0 %519
      %523 = vset.pattern.permute.xlu0 0
      %524 = vperm.xlu0 %523, %v505
      %v525 = vpop.permute.xlu0 %524
      %528 = vset.pattern.permute.xlu0 0
      %529 = vperm.xlu0 %528, %v506
      %v530 = vpop.permute.xlu0 %529
      %v532 = vlaneseq
      %v533 = vshrl.u32 %v532, 7
      %v534 = vsub.s32 0, %v533
      %v535 = vrot.slane %v511, %v534
      %v536 = vmul.f32 %v515, %v535
      %v537 = vmul.f32 %v520, %v535
      %v538 = vmul.f32 %v525, %v535
      %v539 = vmul.f32 %v530, %v535
      %v540 = vunpack.c.l.bf16 %v498
      %542 = vset.pattern.permute.xlu0 0
      %543 = vperm.xlu0 %542, %v507
      %v544 = vpop.permute.xlu0 %543
      %547 = vset.pattern.permute.xlu0 0
      %548 = vperm.xlu0 %547, %v508
      %v549 = vpop.permute.xlu0 %548
      %552 = vset.pattern.permute.xlu0 0
      %553 = vperm.xlu0 %552, %v509
      %v554 = vpop.permute.xlu0 %553
      %557 = vset.pattern.permute.xlu0 0
      %558 = vperm.xlu0 %557, %v510
      %v559 = vpop.permute.xlu0 %558
      %v561 = vlaneseq
      %v562 = vshrl.u32 %v561, 7
      %v563 = vsub.s32 0, %v562
      %v564 = vrot.slane %v540, %v563
      %v565 = vmul.f32 %v544, %v564
      %v566 = vmul.f32 %v549, %v564
      %v567 = vmul.f32 %v554, %v564
      %v568 = vmul.f32 %v559, %v564
      %v569 = vadd.f32 %v536, %v565
      %v570 = vadd.f32 %v537, %v566
      %v571 = vadd.f32 %v538, %v567
      %v572 = vadd.f32 %v539, %v568
      %v573 = vpack.c.bf16 %v570, %v569
      %v575 = vunpack.c.l.b16 %v573
      %v576 = vunpack.c.h.b16 %v573
      %v577 = vpack.c.b16 %v575, %v575
      %v578 = vpack.c.b16 %v576, %v576
      %vm581 = vcmask 27648
      %582 = vst.msk [vmem:[%s224] sm:$0xf] %vm581, %v577
      %583 = vst.msk [vmem:[%s224 + $0x4] sm:$0xf] %vm581, %v578
      %v584 = vmul.f32 %v569, 0.6666667
      %v585 = vmul.f32 %v570, 0.6666667
      %v586 = vmul.f32 %v571, 0.33333334
      %v587 = vmul.f32 %v572, 0.33333334
      %v588 = vadd.f32 %v584, %v586
      %v589 = vadd.f32 %v585, %v587
      %v590 = vpack.c.bf16 %v589, %v588
      %v592 = vunpack.c.l.b16 %v590
      %v593 = vunpack.c.h.b16 %v590
      %v594 = vpack.c.b16 %v592, %v592
      %v595 = vpack.c.b16 %v593, %v593
      %s598 = scalar_lea.vmem %s224, 8
      %599 = vst.msk [vmem:[%s598] sm:$0xf] %vm581, %v594
      %600 = vst.msk [vmem:[%s598 + $0x4] sm:$0xf] %vm581, %v595
      %v601 = vmul.f32 %v569, 0.33333334
      %v602 = vmul.f32 %v570, 0.33333334
      %v603 = vmul.f32 %v571, 0.6666667
      %v604 = vmul.f32 %v572, 0.6666667
      %v605 = vadd.f32 %v601, %v603
      %v606 = vadd.f32 %v602, %v604
      %v607 = vpack.c.bf16 %v606, %v605
      %v609 = vunpack.c.l.b16 %v607
      %v610 = vunpack.c.h.b16 %v607
      %v611 = vpack.c.b16 %v609, %v609
      %v612 = vpack.c.b16 %v610, %v610
      %s615 = scalar_lea.vmem %s224, 16
      %616 = vst.msk [vmem:[%s615] sm:$0xf] %vm581, %v611
      %617 = vst.msk [vmem:[%s615 + $0x4] sm:$0xf] %vm581, %v612
      %v618 = vpack.c.bf16 %v572, %v571
      %v620 = vunpack.c.l.b16 %v618
      %v621 = vunpack.c.h.b16 %v618
      %v622 = vpack.c.b16 %v620, %v620
      %v623 = vpack.c.b16 %v621, %v621
      %s626 = scalar_lea.vmem %s224, 24
      %627 = vst.msk [vmem:[%s626] sm:$0xf] %vm581, %v622
      %628 = vst.msk [vmem:[%s626 + $0x4] sm:$0xf] %vm581, %v623
      %p629 = scmp.lt.s32.totalorder %s16, 1
      %s630 = scalar_select %p629, %s16, 1
      %s631 = smul.addr %s630, 8
      %s632 = smul.addr %s631, 4
      %s633 = scalar_lea.vmem %s5, %s632
      // Predicated region
      $region41: #{_lambda_.3} parent=39 // pred_check
        %p634 = pneg %p144
      $region42: #{_lambda_.3} parent=39 // pred_check_branch
        %636 = sbr.rel (%p634) target = $region44
      $region43: #{_lambda_.3} parent=39 // pred_region
        _
      $region44: #{_lambda_.3} parent=39 // pred_fallthru
        _
    $region40: #{_lambda_.3} parent=5 // pred_fallthru
      _
    %p637 = scmp.le.s32.totalorder 2, %s11
    // Predicated region
    $region45: #{_lambda_.3} parent=5 // pred_check
      %p638 = pneg %p637
    $region46: #{_lambda_.3} parent=5 // pred_check_branch
      %640 = sbr.rel (%p638) target = $region48
    $region47: #{_lambda_.3} parent=5 // pred_region
      %s641 = ssub.s32 %s11, 2
      // Predicated region
      $region49: #{_lambda_.3} parent=47 // pred_check
        %p642 = pneg %p150
      $region50: #{_lambda_.3} parent=47 // pred_check_branch
        %644 = sbr.rel (%p642) target = $region52
      $region51: #{_lambda_.3} parent=47 // pred_region
        %p645 = scmp.lt.s32.totalorder %s17, 1
        %s646 = scalar_select %p645, %s17, 1
        %s647 = smul.addr %s646, 8
        %s648 = smul.addr %s647, 4
        %s649 = scalar_lea.vmem %s5, %s648
      $region52: #{_lambda_.3} parent=47 // pred_fallthru
        _
    $region48: #{_lambda_.3} parent=5 // pred_fallthru
      _
  $region6: #{_lambda_.3} parent=0 // loop_footer
    %s15 = sadd.s32 1, %s11
  $region7: #{_lambda_.3} parent=0 // loop_footer_branch
    %10 = sbr.rel target = $region3
  $region8: #{_lambda_.3} parent=0 // loop_exit
    _

// kernel: _lambda_.4
$region0: #{_lambda_.4}
  #allocation0 [shape = 'u32[]', space=smem, size = 0x4, offset = 0x4, fixed_abs, tag = 'smem constant byte address 0x4 - core index']
  #allocation1 [shape = 'u32[144,128]{1,0:T(1,128)}', space=vmem, size = 0x12000, scoped, tag = 'internal scratch']
  #allocation2 [shape = 'bf16[32,16]{1,0:T(16,128)(2,1)}', space=vmem, size = 0x2000, scoped, tag = 'scratch operand']
  %s0 = inlined_call_operand.vmem [shape: bf16[2,64,16], index: 0, kind: input, shape index: {}]
  %s1 = inlined_call_operand.vmem [shape: bf16[32,64], index: 1, kind: input, shape index: {}]
  %s2 = inlined_call_operand.vmem [shape: f32[8,1], index: 2, kind: input, shape index: {}]
  %s3 = inlined_call_operand.vmem [shape: f32[8,1], index: 3, kind: input, shape index: {}]
  %s4 = inlined_call_operand.vmem [shape: bf16[2,4,16], index: 4, kind: input, shape index: {}]
  %s5 = inlined_call_operand.vmem [shape: bf16[2,16,8,16], index: 5, kind: output, shape index: {}]
  %s6 = sld [smem:[#allocation0]]
  $region53: #{_lambda_.4} parent=0
    _
  %s8 = ssub.s32 1, %s6
  %s9 = scalar_select 0, %s8, %s6
  loop: start=0, step=1, limit=4
  $region2: #{_lambda_.4} parent=0 // loop_pre_header
    _
  $region3: #{_lambda_.4} parent=0 // loop_header
    %s11 = sphi 0, %s15
    %p12 = scmp.ge.s32.totalorder %s11, 4
    %s21 = sphi 0, %s23
    %s24 = sphi 0, %s21
    %s25 = sphi 0, %s24
    %s41 = sphi 0, %s25
    %s45 = sphi 0, %s45
    %s47 = sphi 0, %s45
    %s48 = sphi 0, %s47
    %s62 = sphi 0, %s48
    %s66 = sphi 0, %s66
    %s68 = sphi 0, %s66
    %s69 = sphi 0, %s68
    %s83 = sphi 0, %s69
    %s87 = sphi 0, %s87
    %s89 = sphi 0, %s87
    %s90 = sphi 0, %s89
    %s104 = sphi 0, %s90
    %s108 = sphi 0, %s108
    %s110 = sphi 0, %s108
    %s111 = sphi 0, %s110
    %s125 = sphi 0, %s111
    %s131 = sphi 0, %s133
    %s134 = sphi 0, %s131
    %s135 = sphi 0, %s134
    %s151 = sphi 0, %s135
  $region4: #{_lambda_.4} parent=0 // loop_header_branch
    %14 = sbr.rel (%p12) target = $region8
  $region5: #{_lambda_.4} parent=0 // loop_body
    %s16 = ssub.s32 %s11, 1
    %s17 = ssub.s32 %s11, 2
    %s18 = sadd.s32 %s11, 1
    %s19 = ssub.s32 %s11, %s18
    %p20 = scmp.eq.s32.totalorder %s19, 0
    %s22 = sadd.s32 %s21, 1
    %s23 = scalar_select %p20, %s21, %s22
    %p26 = pneg %p20
    %p27 = scmp.eq.s32.totalorder %s11, 1
    %p28 = por %p26, %p27
    %p29 = scmp.ne.s32.totalorder %s21, %s24
    %p30 = scmp.eq.s32.totalorder %s11, 0
    %p31 = por %p29, %p30
    %p32 = scmp.ne.s32.totalorder %s21, %s24
    %p33 = scmp.eq.s32.totalorder %s16, 1
    %p34 = por %p32, %p33
    %p35 = scmp.ne.s32.totalorder %s24, %s25
    %p36 = scmp.eq.s32.totalorder %s16, 0
    %p37 = por %p35, %p36
    %p38 = scmp.ne.s32.totalorder %s24, %s25
    %p39 = scmp.eq.s32.totalorder %s17, 1
    %p40 = por %p38, %p39
    %p42 = scmp.ne.s32.totalorder %s25, %s41
    %p43 = scmp.eq.s32.totalorder %s17, 0
    %p44 = por %p42, %p43
    %s46 = sadd.s32 %s45, 1
    %p49 = scmp.eq.s32.totalorder %s11, 1
    %p50 = scmp.ne.s32.totalorder %s45, %s47
    %p51 = scmp.eq.s32.totalorder %s11, 0
    %p52 = por %p50, %p51
    %p53 = scmp.ne.s32.totalorder %s45, %s47
    %p54 = scmp.eq.s32.totalorder %s16, 1
    %p55 = por %p53, %p54
    %p56 = scmp.ne.s32.totalorder %s47, %s48
    %p57 = scmp.eq.s32.totalorder %s16, 0
    %p58 = por %p56, %p57
    %p59 = scmp.ne.s32.totalorder %s47, %s48
    %p60 = scmp.eq.s32.totalorder %s17, 1
    %p61 = por %p59, %p60
    %p63 = scmp.ne.s32.totalorder %s48, %s62
    %p64 = scmp.eq.s32.totalorder %s17, 0
    %p65 = por %p63, %p64
    %s67 = sadd.s32 %s66, 1
    %p70 = scmp.eq.s32.totalorder %s11, 1
    %p71 = scmp.ne.s32.totalorder %s66, %s68
    %p72 = scmp.eq.s32.totalorder %s11, 0
    %p73 = por %p71, %p72
    %p74 = scmp.ne.s32.totalorder %s66, %s68
    %p75 = scmp.eq.s32.totalorder %s16, 1
    %p76 = por %p74, %p75
    %p77 = scmp.ne.s32.totalorder %s68, %s69
    %p78 = scmp.eq.s32.totalorder %s16, 0
    %p79 = por %p77, %p78
    %p80 = scmp.ne.s32.totalorder %s68, %s69
    %p81 = scmp.eq.s32.totalorder %s17, 1
    %p82 = por %p80, %p81
    %p84 = scmp.ne.s32.totalorder %s69, %s83
    %p85 = scmp.eq.s32.totalorder %s17, 0
    %p86 = por %p84, %p85
    %s88 = sadd.s32 %s87, 1
    %p91 = scmp.eq.s32.totalorder %s11, 1
    %p92 = scmp.ne.s32.totalorder %s87, %s89
    %p93 = scmp.eq.s32.totalorder %s11, 0
    %p94 = por %p92, %p93
    %p95 = scmp.ne.s32.totalorder %s87, %s89
    %p96 = scmp.eq.s32.totalorder %s16, 1
    %p97 = por %p95, %p96
    %p98 = scmp.ne.s32.totalorder %s89, %s90
    %p99 = scmp.eq.s32.totalorder %s16, 0
    %p100 = por %p98, %p99
    %p101 = scmp.ne.s32.totalorder %s89, %s90
    %p102 = scmp.eq.s32.totalorder %s17, 1
    %p103 = por %p101, %p102
    %p105 = scmp.ne.s32.totalorder %s90, %s104
    %p106 = scmp.eq.s32.totalorder %s17, 0
    %p107 = por %p105, %p106
    %s109 = sadd.s32 %s108, 1
    %p112 = scmp.eq.s32.totalorder %s11, 1
    %p113 = scmp.ne.s32.totalorder %s108, %s110
    %p114 = scmp.eq.s32.totalorder %s11, 0
    %p115 = por %p113, %p114
    %p116 = scmp.ne.s32.totalorder %s108, %s110
    %p117 = scmp.eq.s32.totalorder %s16, 1
    %p118 = por %p116, %p117
    %p119 = scmp.ne.s32.totalorder %s110, %s111
    %p120 = scmp.eq.s32.totalorder %s16, 0
    %p121 = por %p119, %p120
    %p122 = scmp.ne.s32.totalorder %s110, %s111
    %p123 = scmp.eq.s32.totalorder %s17, 1
    %p124 = por %p122, %p123
    %p126 = scmp.ne.s32.totalorder %s111, %s125
    %p127 = scmp.eq.s32.totalorder %s17, 0
    %p128 = por %p126, %p127
    %s129 = ssub.s32 %s11, %s18
    %p130 = scmp.eq.s32.totalorder %s129, 0
    %s132 = sadd.s32 %s131, 1
    %s133 = scalar_select %p130, %s131, %s132
    %p136 = pneg %p130
    %p137 = scmp.eq.s32.totalorder %s11, 1
    %p138 = por %p136, %p137
    %p139 = scmp.ne.s32.totalorder %s131, %s134
    %p140 = scmp.eq.s32.totalorder %s11, 0
    %p141 = por %p139, %p140
    %p142 = scmp.ne.s32.totalorder %s131, %s134
    %p143 = scmp.eq.s32.totalorder %s16, 1
    %p144 = por %p142, %p143
    %p145 = scmp.ne.s32.totalorder %s134, %s135
    %p146 = scmp.eq.s32.totalorder %s16, 0
    %p147 = por %p145, %p146
    %p148 = scmp.ne.s32.totalorder %s134, %s135
    %p149 = scmp.eq.s32.totalorder %s17, 1
    %p150 = por %p148, %p149
    %p152 = scmp.ne.s32.totalorder %s135, %s151
    %p153 = scmp.eq.s32.totalorder %s17, 0
    %p154 = por %p152, %p153
    %p155 = scmp.le.s32.totalorder 1, %s11
    %p156 = scmp.lt.s32.totalorder %s11, 3
    %p157 = pnand %p155, %p156
    %p158 = pneg %p157
    // Predicated region
    $region9: #{_lambda_.4} parent=5 // pred_check
      _
    $region10: #{_lambda_.4} parent=5 // pred_check_branch
      %160 = sbr.rel (%p157) target = $region12
    $region11: #{_lambda_.4} parent=5 // pred_region
      %s161 = ssub.s32 %s11, 1
      // Predicated region
      $region13: #{_lambda_.4} parent=11 // pred_check
        %p162 = pneg %p58
      $region14: #{_lambda_.4} parent=11 // pred_check_branch
        %164 = sbr.rel (%p162) target = $region16
      $region15: #{_lambda_.4} parent=11 // pred_region
        _
      $region16: #{_lambda_.4} parent=11 // pred_fallthru
        _
      // Predicated region
      $region17: #{_lambda_.4} parent=11 // pred_check
        %p165 = pneg %p79
      $region18: #{_lambda_.4} parent=11 // pred_check_branch
        %167 = sbr.rel (%p165) target = $region20
      $region19: #{_lambda_.4} parent=11 // pred_region
        _
      $region20: #{_lambda_.4} parent=11 // pred_fallthru
        _
      // Predicated region
      $region21: #{_lambda_.4} parent=11 // pred_check
        %p168 = pneg %p100
      $region22: #{_lambda_.4} parent=11 // pred_check_branch
        %170 = sbr.rel (%p168) target = $region24
      $region23: #{_lambda_.4} parent=11 // pred_region
        _
      $region24: #{_lambda_.4} parent=11 // pred_fallthru
        _
      // Predicated region
      $region25: #{_lambda_.4} parent=11 // pred_check
        %p171 = pneg %p121
      $region26: #{_lambda_.4} parent=11 // pred_check_branch
        %173 = sbr.rel (%p171) target = $region28
      $region27: #{_lambda_.4} parent=11 // pred_region
        _
      $region28: #{_lambda_.4} parent=11 // pred_fallthru
        _
    $region12: #{_lambda_.4} parent=5 // pred_fallthru
      _
    %p174 = scmp.lt.s32.totalorder %s11, 2
    // Predicated region
    $region29: #{_lambda_.4} parent=5 // pred_check
      %p175 = pneg %p174
    $region30: #{_lambda_.4} parent=5 // pred_check_branch
      %177 = sbr.rel (%p175) target = $region32
    $region31: #{_lambda_.4} parent=5 // pred_region
      // Predicated region
      $region33: #{_lambda_.4} parent=31 // pred_check
        %p178 = pneg %p31
      $region34: #{_lambda_.4} parent=31 // pred_check_branch
        %180 = sbr.rel (%p178) target = $region36
      $region35: #{_lambda_.4} parent=31 // pred_region
        %p181 = scmp.lt.s32.totalorder %s11, 1
        %s182 = scalar_select %p181, %s11, 1
        %s183 = smul.addr %s182, 8
        %s184 = smul.addr %s183, 4
        %s185 = scalar_lea.vmem %s0, %s184
      $region36: #{_lambda_.4} parent=31 // pred_fallthru
        _
    $region32: #{_lambda_.4} parent=5 // pred_fallthru
      _
    %p186 = scmp.le.s32.totalorder 1, %s11
    %p187 = scmp.lt.s32.totalorder %s11, 3
    %p188 = pnand %p186, %p187
    %p189 = pneg %p188
    // Predicated region
    $region37: #{_lambda_.4} parent=5 // pred_check
      _
    $region38: #{_lambda_.4} parent=5 // pred_check_branch
      %191 = sbr.rel (%p188) target = $region40
    $region39: #{_lambda_.4} parent=5 // pred_region
      %s192 = ssub.s32 %s11, 1
      %p193 = scmp.lt.s32.totalorder %s16, 1
      %s194 = scalar_select %p193, %s16, 1
      %s195 = smul.addr %s194, 8
      %s196 = smul.addr %s195, 4
      %s197 = scalar_lea.vmem %s0, %s196
      %p198 = pneg %p37
      %p199 = pneg %p34
      %p200 = pneg %p58
      %p201 = pneg %p55
      %p202 = pneg %p79
      %p203 = pneg %p76
      %p204 = pneg %p100
      %p205 = pneg %p97
      %p206 = pneg %p121
      %p207 = pneg %p118
      %p208 = pneg %p147
      %p209 = pneg %p144
      %p210 = scmp.lt.s32.totalorder %s16, 1
      %s211 = scalar_select %p210, %s16, 1
      %s212 = smul.addr %s211, 16
      %s213 = smul.addr %s212, 4
      %s214 = scalar_lea.vmem %s5, %s213
      %p215 = scmp.lt.s32.totalorder %s16, 1
      %s216 = scalar_select %p215, %s16, 1
      %s217 = smul.addr %s216, 8
      %s218 = smul.addr %s217, 4
      %s219 = scalar_lea.vmem %s0, %s218
      %p220 = scmp.lt.s32.totalorder %s16, 1
      %s221 = scalar_select %p220, %s16, 1
      %s222 = smul.addr %s221, 16
      %s223 = smul.addr %s222, 4
      %s224 = scalar_lea.vmem %s5, %s223
      %v226 = vld [vmem:[%s1] sm:$0xf]
      %v227 = vld [vmem:[%s1 + $0x4] sm:$0xf]
      %v228 = vld [vmem:[%s1 + $0x8] sm:$0xf]
      %v229 = vld [vmem:[%s1 + $0xc] sm:$0xf]
      %v230 = vld [vmem:[%s219] sm:$0xf]
      %v231 = vld [vmem:[%s219 + $0x4] sm:$0xf]
      %v232 = vld [vmem:[%s219 + $0x8] sm:$0xf]
      %v233 = vld [vmem:[%s219 + $0xc] sm:$0xf]
      %v234 = vld [vmem:[%s219 + $0x10] sm:$0xf]
      %v235 = vld [vmem:[%s219 + $0x14] sm:$0xf]
      %v236 = vld [vmem:[%s219 + $0x18] sm:$0xf]
      %v237 = vld [vmem:[%s219 + $0x1c] sm:$0xf]
      %v242 = vunpack.c.l.b16 %v226
      %v243 = vunpack.c.l.b16 %v227
      %v244 = vunpack.c.l.b16 %v228
      %v245 = vunpack.c.l.b16 %v229
      %v246 = vpack.c.b16 %v243, %v242
      %v247 = vpack.c.b16 %v245, %v244
      %v256 = vunpack.c.l.b16 %v230
      %v257 = vunpack.c.l.b16 %v231
      %v258 = vunpack.c.l.b16 %v232
      %v259 = vunpack.c.l.b16 %v233
      %v260 = vunpack.c.l.b16 %v234
      %v261 = vunpack.c.l.b16 %v235
      %v262 = vunpack.c.l.b16 %v236
      %v263 = vunpack.c.l.b16 %v237
      %v264 = vpack.c.b16 %v257, %v256
      %v265 = vpack.c.b16 %v259, %v258
      %v266 = vpack.c.b16 %v261, %v260
      %v267 = vpack.c.b16 %v263, %v262
      %vm272 = vcmask 523264
      %v274 = vsel %vm272, %v246, 0
      %v277 = vsel %vm272, %v247, 0
      %279 = vmatprep.subr.bf16.mxu0 0
      %280 = vmatpush1.bf16.msra.mxu0 %v264
      %281 = vmatprep.subr.bf16.mxu0 0
      %282 = vmatpush1.bf16.msra.mxu0 %v265
      %283 = vmatprep.subr.bf16.mxu0 0
      %284 = vmatpush1.bf16.msra.mxu0 %v266
      %285 = vmatprep.subr.bf16.mxu0 0
      %286 = vmatpush1.bf16.msra.mxu0 %v267
      %287 = vmatprep.subr.bf16.mxu0 0
      %288 = vmatpush1.bf16.msra.mxu0 0
      %289 = vmatprep.subr.bf16.mxu0 0
      %290 = vmatpush1.bf16.msra.mxu0 0
      %291 = vmatprep.subr.bf16.mxu0 0
      %292 = vmatpush1.bf16.msra.mxu0 0
      %293 = vmatprep.subr.bf16.mxu0 0
      %294 = vmatpush1.bf16.msra.mxu0 0
      %295 = vmatprep.subr.bf16.mxu0 0
      %296 = vmatpush1.bf16.msra.mxu0 0
      %297 = vmatprep.subr.bf16.mxu0 0
      %298 = vmatpush1.bf16.msra.mxu0 0
      %299 = vmatprep.subr.bf16.mxu0 0
      %300 = vmatpush1.bf16.msra.mxu0 0
      %301 = vmatprep.subr.bf16.mxu0 0
      %302 = vmatpush1.bf16.msra.mxu0 0
      %303 = vmatprep.subr.bf16.mxu0 0
      %304 = vmatpush1.bf16.msra.mxu0 0
      %305 = vmatprep.subr.bf16.mxu0 0
      %306 = vmatpush1.bf16.msra.mxu0 0
      %307 = vmatprep.subr.bf16.mxu0 0
      %308 = vmatpush1.bf16.msra.mxu0 0
      %309 = vmatprep.subr.bf16.mxu0 0
      %310 = vmatpush1.bf16.msra.mxu0 0
      %311 = vmatprep.mubr.bf16.mxu0 0
      %312 = vmatmul.mubr.bf16.gmra.mrb[0].mxu0 %v274
      %v313 = vpop.f32.mrb[0].mxu0
      %v314 = vadd.f32 0.0, %v313
      %v315 = vpop.f32.mrb[0].mxu0
      %v316 = vpop.f32.mrb[0].mxu0
      %v317 = vadd.f32 0.0, %v316
      %v318 = vpop.f32.mrb[0].mxu0
      %319 = vmatprep.mubr.bf16.mxu0 0
      %320 = vmatmul.mubr.bf16.gmra.mrb[0].mxu0 %v277
      %v321 = vpop.f32.mrb[0].mxu0
      %v322 = vadd.f32 0.0, %v321
      %v323 = vpop.f32.mrb[0].mxu0
      %v324 = vpop.f32.mrb[0].mxu0
      %v325 = vadd.f32 0.0, %v324
      %v326 = vpop.f32.mrb[0].mxu0
      %327 = vdwg.mxu0
      %vm328 = vcmask 130048
      %v329 = vsel %vm328, %v314, 0.0
      %330 = vadd.xlane.f32.xlu0 %v329
      %v331 = vpop.xlane.xlu0 %330
      %v332 = vsel %vm328, %v317, 0.0
      %333 = vadd.xlane.f32.xlu0 %v332
      %v334 = vpop.xlane.xlu0 %333
      %v335 = vsel %vm328, %v322, 0.0
      %336 = vadd.xlane.f32.xlu0 %v335
      %v337 = vpop.xlane.xlu0 %336
      %v338 = vsel %vm328, %v325, 0.0
      %339 = vadd.xlane.f32.xlu0 %v338
      %v340 = vpop.xlane.xlu0 %339
      %v341 = vmul.f32 %v314, %v314
      %v342 = vmul.f32 %v317, %v317
      %v343 = vmul.f32 %v322, %v322
      %v344 = vmul.f32 %v325, %v325
      %v345 = vsel %vm328, %v341, 0.0
      %346 = vadd.xlane.f32.xlu0 %v345
      %v347 = vpop.xlane.xlu0 %346
      %v348 = vsel %vm328, %v342, 0.0
      %349 = vadd.xlane.f32.xlu0 %v348
      %v350 = vpop.xlane.xlu0 %349
      %v351 = vsel %vm328, %v343, 0.0
      %352 = vadd.xlane.f32.xlu0 %v351
      %v353 = vpop.xlane.xlu0 %352
      %v354 = vsel %vm328, %v344, 0.0
      %355 = vadd.xlane.f32.xlu0 %v354
      %v356 = vpop.xlane.xlu0 %355
      %v357 = vadd.f32 %v331, %v334
      %v358 = vadd.f32 %v357, %v337
      %v359 = vadd.f32 %v358, %v340
      %v360 = vadd.f32 %v347, %v350
      %v361 = vadd.f32 %v360, %v353
      %v362 = vadd.f32 %v361, %v356
      %v363 = vmul.f32 %v359, 0.015625
      %v364 = vmul.f32 %v362, 0.015625
      %v365 = vmul.f32 %v363, %v363
      %v366 = vsub.f32 %v364, %v365
      %v367 = vmax.f32 %v366, 0.0
      %v368 = vadd.f32 %v367, 1e-05
      %v369 = vrsqrt.pop %v368
      %v370 = vld [vmem:[%s2] sm:$0xff]
      %v371 = vmul.f32 %v369, %v370
      %v372 = vld [vmem:[%s3] sm:$0xff]
      %v373 = vmul.f32 %v363, %v371
      %v374 = vsub.f32 %v372, %v373
      %376 = vset.pattern.permute.xlu0 0
      %377 = vperm.xlu0 %376, %v371
      %v378 = vpop.permute.xlu0 %377
      %v380 = vmul.f32 %v314, %v378
      %v381 = vmul.f32 %v317, %v378
      %v382 = vmul.f32 %v322, %v378
      %v383 = vmul.f32 %v325, %v378
      %385 = vset.pattern.permute.xlu0 0
      %386 = vperm.xlu0 %385, %v374
      %v387 = vpop.permute.xlu0 %386
      %v389 = vadd.f32 %v380, %v387
      %v390 = vadd.f32 %v381, %v387
      %v391 = vadd.f32 %v382, %v387
      %v392 = vadd.f32 %v383, %v387
      %vm393 = vcmp.ge.f32.partialorder %v389, 0.0
      %vm394 = vcmp.ge.f32.partialorder %v390, 0.0
      %vm395 = vcmp.ge.f32.partialorder %v391, 0.0
      %vm396 = vcmp.ge.f32.partialorder %v392, 0.0
      %v397 = vmul.f32 %v389, 0.01
      %v398 = vmul.f32 %v390, 0.01
      %v399 = vmul.f32 %v391, 0.01
      %v400 = vmul.f32 %v392, 0.01
      %v401 = vsel %vm393, %v389, %v397
      %v402 = vsel %vm394, %v390, %v398
      %v403 = vsel %vm395, %v391, %v399
      %v404 = vsel %vm396, %v392, %v400
      %v405 = vpack.c.bf16 %v402, %v401
      %v406 = vpack.c.bf16 %v404, %v403
      %407 = vst.msk [vmem:[#allocation2] sm:$0xff] %vm328, %v405
      %408 = vst.msk [vmem:[#allocation2 + $0x8] sm:$0xff] %vm328, %v406
      %v409 = vld [vmem:[%s4] sm:$0x3]
      %s410 = scalar_lea.vmem %s4, 2
      %v411 = vld [vmem:[%s410] sm:$0x3]
      %v412 = vld [vmem:[#allocation2] sm:$0xff]
      %v413 = vld [vmem:[#allocation2 + $0x8] sm:$0xff]
      %vm414 = vcmask 31744
      %v416 = vsel %vm414, %v413, 0
      %vm418 = vcmask 1041408
      %v420 = vsel %vm418, %v411, 0
      %422 = vmatprep.subr.bf16.mxu0 0
      %423 = vmatpush1.bf16.msra.mxu0 %v420
      %424 = vmatprep.subr.bf16.mxu0 0
      %425 = vmatpush1.bf16.msra.mxu0 0
      %426 = vmatprep.subr.bf16.mxu0 0
      %427 = vmatpush1.bf16.msra.mxu0 0
      %428 = vmatprep.subr.bf16.mxu0 0
      %429 = vmatpush1.bf16.msra.mxu0 0
      %430 = vmatprep.subr.bf16.mxu0 0
      %431 = vmatpush1.bf16.msra.mxu0 0
      %432 = vmatprep.subr.bf16.mxu0 0
      %433 = vmatpush1.bf16.msra.mxu0 0
      %434 = vmatprep.subr.bf16.mxu0 0
      %435 = vmatpush1.bf16.msra.mxu0 0
      %436 = vmatprep.subr.bf16.mxu0 0
      %437 = vmatpush1.bf16.msra.mxu0 0
      %438 = vmatprep.subr.bf16.mxu0 0
      %439 = vmatpush1.bf16.msra.mxu0 0
      %440 = vmatprep.subr.bf16.mxu0 0
      %441 = vmatpush1.bf16.msra.mxu0 0
      %442 = vmatprep.subr.bf16.mxu0 0
      %443 = vmatpush1.bf16.msra.mxu0 0
      %444 = vmatprep.subr.bf16.mxu0 0
      %445 = vmatpush1.bf16.msra.mxu0 0
      %446 = vmatprep.subr.bf16.mxu0 0
      %447 = vmatpush1.bf16.msra.mxu0 0
      %448 = vmatprep.subr.bf16.mxu0 0
      %449 = vmatpush1.bf16.msra.mxu0 0
      %450 = vmatprep.subr.bf16.mxu0 0
      %451 = vmatpush1.bf16.msra.mxu0 0
      %452 = vmatprep.subr.bf16.mxu0 0
      %453 = vmatpush1.bf16.msra.mxu0 0
      %454 = vmatprep.mubr.bf16.mxu0 0
      %455 = vmatmul.mubr.bf16.gmra.mrb[0].mxu0 %v416
      %v456 = vpop.f32.mrb[0].mxu0
      %v457 = vadd.f32 0.0, %v456
      %v458 = vpop.f32.mrb[0].mxu0
      %v459 = vpop.f32.mrb[0].mxu0
      %v460 = vadd.f32 0.0, %v459
      %v461 = vpop.f32.mrb[0].mxu0
      %462 = vdwg.mxu0
      %v464 = vsel %vm414, %v412, 0
      %v467 = vsel %vm418, %v409, 0
      %469 = vmatprep.subr.bf16.mxu0 0
      %470 = vmatpush1.bf16.msra.mxu0 %v467
      %471 = vmatprep.subr.bf16.mxu0 0
      %472 = vmatpush1.bf16.msra.mxu0 0
      %473 = vmatprep.subr.bf16.mxu0 0
      %474 = vmatpush1.bf16.msra.mxu0 0
      %475 = vmatprep.subr.bf16.mxu0 0
      %476 = vmatpush1.bf16.msra.mxu0 0
      %477 = vmatprep.subr.bf16.mxu0 0
      %478 = vmatpush1.bf16.msra.mxu0 0
      %479 = vmatprep.subr.bf16.mxu0 0
      %480 = vmatpush1.bf16.msra.mxu0 0
      %481 = vmatprep.subr.bf16.mxu0 0
      %482 = vmatpush1.bf16.msra.mxu0 0
      %483 = vmatprep.subr.bf16.mxu0 0
      %484 = vmatpush1.bf16.msra.mxu0 0
      %485 = vmatprep.subr.bf16.mxu0 0
      %486 = vmatpush1.bf16.msra.mxu0 0
      %487 = vmatprep.subr.bf16.mxu0 0
      %488 = vmatpush1.bf16.msra.mxu0 0
      %489 = vmatprep.subr.bf16.mxu0 0
      %490 = vmatpush1.bf16.msra.mxu0 0
      %491 = vmatprep.subr.bf16.mxu0 0
      %492 = vmatpush1.bf16.msra.mxu0 0
      %493 = vmatprep.subr.bf16.mxu0 0
      %494 = vmatpush1.bf16.msra.mxu0 0
      %495 = vmatprep.subr.bf16.mxu0 0
      %496 = vmatpush1.bf16.msra.mxu0 0
      %497 = vmatprep.subr.bf16.mxu0 0
      %498 = vmatpush1.bf16.msra.mxu0 0
      %499 = vmatprep.subr.bf16.mxu0 0
      %500 = vmatpush1.bf16.msra.mxu0 0
      %501 = vmatprep.mubr.bf16.mxu0 0
      %502 = vmatmul.mubr.bf16.gmra.mrb[0].mxu0 %v464
      %v503 = vpop.f32.mrb[0].mxu0
      %v504 = vadd.f32 %v457, %v503
      %v505 = vpop.f32.mrb[0].mxu0
      %v506 = vpop.f32.mrb[0].mxu0
      %v507 = vadd.f32 %v460, %v506
      %v508 = vpop.f32.mrb[0].mxu0
      %509 = vdwg.mxu0
      %511 = vrot.lane.b32.xlu0 %v413, 124
      %v512 = vpop.permute.xlu0 %511
      %v514 = vsel %vm414, %v512, 0
      %516 = vmatprep.subr.bf16.mxu0 0
      %517 = vmatpush1.bf16.msra.mxu0 %v420
      %518 = vmatprep.subr.bf16.mxu0 0
      %519 = vmatpush1.bf16.msra.mxu0 0
      %520 = vmatprep.subr.bf16.mxu0 0
      %521 = vmatpush1.bf16.msra.mxu0 0
      %522 = vmatprep.subr.bf16.mxu0 0
      %523 = vmatpush1.bf16.msra.mxu0 0
      %524 = vmatprep.subr.bf16.mxu0 0
      %525 = vmatpush1.bf16.msra.mxu0 0
      %526 = vmatprep.subr.bf16.mxu0 0
      %527 = vmatpush1.bf16.msra.mxu0 0
      %528 = vmatprep.subr.bf16.mxu0 0
      %529 = vmatpush1.bf16.msra.mxu0 0
      %530 = vmatprep.subr.bf16.mxu0 0
      %531 = vmatpush1.bf16.msra.mxu0 0
      %532 = vmatprep.subr.bf16.mxu0 0
      %533 = vmatpush1.bf16.msra.mxu0 0
      %534 = vmatprep.subr.bf16.mxu0 0
      %535 = vmatpush1.bf16.msra.mxu0 0
      %536 = vmatprep.subr.bf16.mxu0 0
      %537 = vmatpush1.bf16.msra.mxu0 0
      %538 = vmatprep.subr.bf16.mxu0 0
      %539 = vmatpush1.bf16.msra.mxu0 0
      %540 = vmatprep.subr.bf16.mxu0 0
      %541 = vmatpush1.bf16.msra.mxu0 0
      %542 = vmatprep.subr.bf16.mxu0 0
      %543 = vmatpush1.bf16.msra.mxu0 0
      %544 = vmatprep.subr.bf16.mxu0 0
      %545 = vmatpush1.bf16.msra.mxu0 0
      %546 = vmatprep.subr.bf16.mxu0 0
      %547 = vmatpush1.bf16.msra.mxu0 0
      %548 = vmatprep.mubr.bf16.mxu0 0
      %549 = vmatmul.mubr.bf16.gmra.mrb[0].mxu0 %v514
      %v550 = vpop.f32.mrb[0].mxu0
      %v551 = vadd.f32 0.0, %v550
      %v552 = vpop.f32.mrb[0].mxu0
      %v553 = vpop.f32.mrb[0].mxu0
      %v554 = vadd.f32 0.0, %v553
      %v555 = vpop.f32.mrb[0].mxu0
      %556 = vdwg.mxu0
      %558 = vrot.lane.b32.xlu0 %v412, 124
      %v559 = vpop.permute.xlu0 %558
      %v561 = vsel %vm414, %v559, 0
      %563 = vmatprep.subr.bf16.mxu0 0
      %564 = vmatpush1.bf16.msra.mxu0 %v467
      %565 = vmatprep.subr.bf16.mxu0 0
      %566 = vmatpush1.bf16.msra.mxu0 0
      %567 = vmatprep.subr.bf16.mxu0 0
      %568 = vmatpush1.bf16.msra.mxu0 0
      %569 = vmatprep.subr.bf16.mxu0 0
      %570 = vmatpush1.bf16.msra.mxu0 0
      %571 = vmatprep.subr.bf16.mxu0 0
      %572 = vmatpush1.bf16.msra.mxu0 0
      %573 = vmatprep.subr.bf16.mxu0 0
      %574 = vmatpush1.bf16.msra.mxu0 0
      %575 = vmatprep.subr.bf16.mxu0 0
      %576 = vmatpush1.bf16.msra.mxu0 0
      %577 = vmatprep.subr.bf16.mxu0 0
      %578 = vmatpush1.bf16.msra.mxu0 0
      %579 = vmatprep.subr.bf16.mxu0 0
      %580 = vmatpush1.bf16.msra.mxu0 0
      %581 = vmatprep.subr.bf16.mxu0 0
      %582 = vmatpush1.bf16.msra.mxu0 0
      %583 = vmatprep.subr.bf16.mxu0 0
      %584 = vmatpush1.bf16.msra.mxu0 0
      %585 = vmatprep.subr.bf16.mxu0 0
      %586 = vmatpush1.bf16.msra.mxu0 0
      %587 = vmatprep.subr.bf16.mxu0 0
      %588 = vmatpush1.bf16.msra.mxu0 0
      %589 = vmatprep.subr.bf16.mxu0 0
      %590 = vmatpush1.bf16.msra.mxu0 0
      %591 = vmatprep.subr.bf16.mxu0 0
      %592 = vmatpush1.bf16.msra.mxu0 0
      %593 = vmatprep.subr.bf16.mxu0 0
      %594 = vmatpush1.bf16.msra.mxu0 0
      %595 = vmatprep.mubr.bf16.mxu0 0
      %596 = vmatmul.mubr.bf16.gmra.mrb[0].mxu0 %v561
      %v597 = vpop.f32.mrb[0].mxu0
      %v598 = vadd.f32 %v551, %v597
      %v599 = vpop.f32.mrb[0].mxu0
      %v600 = vpop.f32.mrb[0].mxu0
      %v601 = vadd.f32 %v554, %v600
      %v602 = vpop.f32.mrb[0].mxu0
      %603 = vdwg.mxu0
      %604 = vrot.lane.b32.xlu0 %v413, 120
      %v605 = vpop.permute.xlu0 %604
      %v607 = vsel %vm414, %v605, 0
      %609 = vmatprep.subr.bf16.mxu0 0
      %610 = vmatpush1.bf16.msra.mxu0 %v420
      %611 = vmatprep.subr.bf16.mxu0 0
      %612 = vmatpush1.bf16.msra.mxu0 0
      %613 = vmatprep.subr.bf16.mxu0 0
      %614 = vmatpush1.bf16.msra.mxu0 0
      %615 = vmatprep.subr.bf16.mxu0 0
      %616 = vmatpush1.bf16.msra.mxu0 0
      %617 = vmatprep.subr.bf16.mxu0 0
      %618 = vmatpush1.bf16.msra.mxu0 0
      %619 = vmatprep.subr.bf16.mxu0 0
      %620 = vmatpush1.bf16.msra.mxu0 0
      %621 = vmatprep.subr.bf16.mxu0 0
      %622 = vmatpush1.bf16.msra.mxu0 0
      %623 = vmatprep.subr.bf16.mxu0 0
      %624 = vmatpush1.bf16.msra.mxu0 0
      %625 = vmatprep.subr.bf16.mxu0 0
      %626 = vmatpush1.bf16.msra.mxu0 0
      %627 = vmatprep.subr.bf16.mxu0 0
      %628 = vmatpush1.bf16.msra.mxu0 0
      %629 = vmatprep.subr.bf16.mxu0 0
      %630 = vmatpush1.bf16.msra.mxu0 0
      %631 = vmatprep.subr.bf16.mxu0 0
      %632 = vmatpush1.bf16.msra.mxu0 0
      %633 = vmatprep.subr.bf16.mxu0 0
      %634 = vmatpush1.bf16.msra.mxu0 0
      %635 = vmatprep.subr.bf16.mxu0 0
      %636 = vmatpush1.bf16.msra.mxu0 0
      %637 = vmatprep.subr.bf16.mxu0 0
      %638 = vmatpush1.bf16.msra.mxu0 0
      %639 = vmatprep.subr.bf16.mxu0 0
      %640 = vmatpush1.bf16.msra.mxu0 0
      %641 = vmatprep.mubr.bf16.mxu0 0
      %642 = vmatmul.mubr.bf16.gmra.mrb[0].mxu0 %v607
      %v643 = vpop.f32.mrb[0].mxu0
      %v644 = vadd.f32 0.0, %v643
      %v645 = vpop.f32.mrb[0].mxu0
      %v646 = vpop.f32.mrb[0].mxu0
      %v647 = vadd.f32 0.0, %v646
      %v648 = vpop.f32.mrb[0].mxu0
      %649 = vdwg.mxu0
      %650 = vrot.lane.b32.xlu0 %v412, 120
      %v651 = vpop.permute.xlu0 %650
      %v653 = vsel %vm414, %v651, 0
      %655 = vmatprep.subr.bf16.mxu0 0
      %656 = vmatpush1.bf16.msra.mxu0 %v467
      %657 = vmatprep.subr.bf16.mxu0 0
      %658 = vmatpush1.bf16.msra.mxu0 0
      %659 = vmatprep.subr.bf16.mxu0 0
      %660 = vmatpush1.bf16.msra.mxu0 0
      %661 = vmatprep.subr.bf16.mxu0 0
      %662 = vmatpush1.bf16.msra.mxu0 0
      %663 = vmatprep.subr.bf16.mxu0 0
      %664 = vmatpush1.bf16.msra.mxu0 0
      %665 = vmatprep.subr.bf16.mxu0 0
      %666 = vmatpush1.bf16.msra.mxu0 0
      %667 = vmatprep.subr.bf16.mxu0 0
      %668 = vmatpush1.bf16.msra.mxu0 0
      %669 = vmatprep.subr.bf16.mxu0 0
      %670 = vmatpush1.bf16.msra.mxu0 0
      %671 = vmatprep.subr.bf16.mxu0 0
      %672 = vmatpush1.bf16.msra.mxu0 0
      %673 = vmatprep.subr.bf16.mxu0 0
      %674 = vmatpush1.bf16.msra.mxu0 0
      %675 = vmatprep.subr.bf16.mxu0 0
      %676 = vmatpush1.bf16.msra.mxu0 0
      %677 = vmatprep.subr.bf16.mxu0 0
      %678 = vmatpush1.bf16.msra.mxu0 0
      %679 = vmatprep.subr.bf16.mxu0 0
      %680 = vmatpush1.bf16.msra.mxu0 0
      %681 = vmatprep.subr.bf16.mxu0 0
      %682 = vmatpush1.bf16.msra.mxu0 0
      %683 = vmatprep.subr.bf16.mxu0 0
      %684 = vmatpush1.bf16.msra.mxu0 0
      %685 = vmatprep.subr.bf16.mxu0 0
      %686 = vmatpush1.bf16.msra.mxu0 0
      %687 = vmatprep.mubr.bf16.mxu0 0
      %688 = vmatmul.mubr.bf16.gmra.mrb[0].mxu0 %v653
      %v689 = vpop.f32.mrb[0].mxu0
      %v690 = vadd.f32 %v644, %v689
      %v691 = vpop.f32.mrb[0].mxu0
      %v692 = vpop.f32.mrb[0].mxu0
      %v693 = vadd.f32 %v647, %v692
      %v694 = vpop.f32.mrb[0].mxu0
      %695 = vdwg.mxu0
      %696 = vrot.lane.b32.xlu0 %v413, 116
      %v697 = vpop.permute.xlu0 %696
      %v699 = vsel %vm414, %v697, 0
      %701 = vmatprep.subr.bf16.mxu0 0
      %702 = vmatpush1.bf16.msra.mxu0 %v420
      %703 = vmatprep.subr.bf16.mxu0 0
      %704 = vmatpush1.bf16.msra.mxu0 0
      %705 = vmatprep.subr.bf16.mxu0 0
      %706 = vmatpush1.bf16.msra.mxu0 0
      %707 = vmatprep.subr.bf16.mxu0 0
      %708 = vmatpush1.bf16.msra.mxu0 0
      %709 = vmatprep.subr.bf16.mxu0 0
      %710 = vmatpush1.bf16.msra.mxu0 0
      %711 = vmatprep.subr.bf16.mxu0 0
      %712 = vmatpush1.bf16.msra.mxu0 0
      %713 = vmatprep.subr.bf16.mxu0 0
      %714 = vmatpush1.bf16.msra.mxu0 0
      %715 = vmatprep.subr.bf16.mxu0 0
      %716 = vmatpush1.bf16.msra.mxu0 0
      %717 = vmatprep.subr.bf16.mxu0 0
      %718 = vmatpush1.bf16.msra.mxu0 0
      %719 = vmatprep.subr.bf16.mxu0 0
      %720 = vmatpush1.bf16.msra.mxu0 0
      %721 = vmatprep.subr.bf16.mxu0 0
      %722 = vmatpush1.bf16.msra.mxu0 0
      %723 = vmatprep.subr.bf16.mxu0 0
      %724 = vmatpush1.bf16.msra.mxu0 0
      %725 = vmatprep.subr.bf16.mxu0 0
      %726 = vmatpush1.bf16.msra.mxu0 0
      %727 = vmatprep.subr.bf16.mxu0 0
      %728 = vmatpush1.bf16.msra.mxu0 0
      %729 = vmatprep.subr.bf16.mxu0 0
      %730 = vmatpush1.bf16.msra.mxu0 0
      %731 = vmatprep.subr.bf16.mxu0 0
      %732 = vmatpush1.bf16.msra.mxu0 0
      %733 = vmatprep.mubr.bf16.mxu0 0
      %734 = vmatmul.mubr.bf16.gmra.mrb[0].mxu0 %v699
      %v735 = vpop.f32.mrb[0].mxu0
      %v736 = vadd.f32 0.0, %v735
      %v737 = vpop.f32.mrb[0].mxu0
      %v738 = vpop.f32.mrb[0].mxu0
      %v739 = vadd.f32 0.0, %v738
      %v740 = vpop.f32.mrb[0].mxu0
      %741 = vdwg.mxu0
      %742 = vrot.lane.b32.xlu0 %v412, 116
      %v743 = vpop.permute.xlu0 %742
      %v745 = vsel %vm414, %v743, 0
      %747 = vmatprep.subr.bf16.mxu0 0
      %748 = vmatpush1.bf16.msra.mxu0 %v467
      %749 = vmatprep.subr.bf16.mxu0 0
      %750 = vmatpush1.bf16.msra.mxu0 0
      %751 = vmatprep.subr.bf16.mxu0 0
      %752 = vmatpush1.bf16.msra.mxu0 0
      %753 = vmatprep.subr.bf16.mxu0 0
      %754 = vmatpush1.bf16.msra.mxu0 0
      %755 = vmatprep.subr.bf16.mxu0 0
      %756 = vmatpush1.bf16.msra.mxu0 0
      %757 = vmatprep.subr.bf16.mxu0 0
      %758 = vmatpush1.bf16.msra.mxu0 0
      %759 = vmatprep.subr.bf16.mxu0 0
      %760 = vmatpush1.bf16.msra.mxu0 0
      %761 = vmatprep.subr.bf16.mxu0 0
      %762 = vmatpush1.bf16.msra.mxu0 0
      %763 = vmatprep.subr.bf16.mxu0 0
      %764 = vmatpush1.bf16.msra.mxu0 0
      %765 = vmatprep.subr.bf16.mxu0 0
      %766 = vmatpush1.bf16.msra.mxu0 0
      %767 = vmatprep.subr.bf16.mxu0 0
      %768 = vmatpush1.bf16.msra.mxu0 0
      %769 = vmatprep.subr.bf16.mxu0 0
      %770 = vmatpush1.bf16.msra.mxu0 0
      %771 = vmatprep.subr.bf16.mxu0 0
      %772 = vmatpush1.bf16.msra.mxu0 0
      %773 = vmatprep.subr.bf16.mxu0 0
      %774 = vmatpush1.bf16.msra.mxu0 0
      %775 = vmatprep.subr.bf16.mxu0 0
      %776 = vmatpush1.bf16.msra.mxu0 0
      %777 = vmatprep.subr.bf16.mxu0 0
      %778 = vmatpush1.bf16.msra.mxu0 0
      %779 = vmatprep.mubr.bf16.mxu0 0
      %780 = vmatmul.mubr.bf16.gmra.mrb[0].mxu0 %v745
      %v781 = vpop.f32.mrb[0].mxu0
      %v782 = vadd.f32 %v736, %v781
      %v783 = vpop.f32.mrb[0].mxu0
      %v784 = vpop.f32.mrb[0].mxu0
      %v785 = vadd.f32 %v739, %v784
      %v786 = vpop.f32.mrb[0].mxu0
      %787 = vdwg.mxu0
      %v788 = vpack.c.bf16 %v504, %v504
      %vm789 = vcmask 125952
      %790 = vst.msk [vmem:[%s224] sm:$0xf] %vm789, %v788
      %v791 = vmul.f32 %v504, 0.53333336
      %v792 = vmul.f32 %v507, 0.46666667
      %v793 = vadd.f32 %v791, %v792
      %v794 = vpack.c.bf16 %v793, %v793
      %s795 = scalar_lea.vmem %s224, 4
      %796 = vst.msk [vmem:[%s795] sm:$0xf] %vm789, %v794
      %v797 = vmul.f32 %v504, 0.06666667
      %v798 = vmul.f32 %v507, 0.93333334
      %v799 = vadd.f32 %v797, %v798
      %v800 = vpack.c.bf16 %v799, %v799
      %s801 = scalar_lea.vmem %s224, 8
      %802 = vst.msk [vmem:[%s801] sm:$0xf] %vm789, %v800
      %v803 = vmul.f32 %v507, 0.6
      %v804 = vmul.f32 %v598, 0.4
      %v805 = vadd.f32 %v803, %v804
      %v806 = vpack.c.bf16 %v805, %v805
      %s807 = scalar_lea.vmem %s224, 12
      %808 = vst.msk [vmem:[%s807] sm:$0xf] %vm789, %v806
      %v809 = vmul.f32 %v507, 0.13333334
      %v810 = vmul.f32 %v598, 0.8666667
      %v811 = vadd.f32 %v809, %v810
      %v812 = vpack.c.bf16 %v811, %v811
      %s813 = scalar_lea.vmem %s224, 16
      %814 = vst.msk [vmem:[%s813] sm:$0xf] %vm789, %v812
      %v815 = vmul.f32 %v598, 0.6666667
      %v816 = vmul.f32 %v601, 0.33333334
      %v817 = vadd.f32 %v815, %v816
      %v818 = vpack.c.bf16 %v817, %v817
      %s819 = scalar_lea.vmem %s224, 20
      %820 = vst.msk [vmem:[%s819] sm:$0xf] %vm789, %v818
      %v821 = vmul.f32 %v598, 0.2
      %v822 = vmul.f32 %v601, 0.8
      %v823 = vadd.f32 %v821, %v822
      %v824 = vpack.c.bf16 %v823, %v823
      %s825 = scalar_lea.vmem %s224, 24
      %826 = vst.msk [vmem:[%s825] sm:$0xf] %vm789, %v824
      %v827 = vmul.f32 %v601, 0.73333335
      %v828 = vmul.f32 %v690, 0.26666668
      %v829 = vadd.f32 %v827, %v828
      %v830 = vpack.c.bf16 %v829, %v829
      %s831 = scalar_lea.vmem %s224, 28
      %832 = vst.msk [vmem:[%s831] sm:$0xf] %vm789, %v830
      %v833 = vmul.f32 %v601, 0.26666668
      %v834 = vmul.f32 %v690, 0.73333335
      %v835 = vadd.f32 %v833, %v834
      %v836 = vpack.c.bf16 %v835, %v835
      %s837 = scalar_lea.vmem %s224, 32
      %838 = vst.msk [vmem:[%s837] sm:$0xf] %vm789, %v836
      %v839 = vmul.f32 %v690, 0.8
      %v840 = vmul.f32 %v693, 0.2
      %v841 = vadd.f32 %v839, %v840
      %v842 = vpack.c.bf16 %v841, %v841
      %s843 = scalar_lea.vmem %s224, 36
      %844 = vst.msk [vmem:[%s843] sm:$0xf] %vm789, %v842
      %v845 = vmul.f32 %v690, 0.33333334
      %v846 = vmul.f32 %v693, 0.6666667
      %v847 = vadd.f32 %v845, %v846
      %v848 = vpack.c.bf16 %v847, %v847
      %s849 = scalar_lea.vmem %s224, 40
      %850 = vst.msk [vmem:[%s849] sm:$0xf] %vm789, %v848
      %v851 = vmul.f32 %v693, 0.8666667
      %v852 = vmul.f32 %v782, 0.13333334
      %v853 = vadd.f32 %v851, %v852
      %v854 = vpack.c.bf16 %v853, %v853
      %s855 = scalar_lea.vmem %s224, 44
      %856 = vst.msk [vmem:[%s855] sm:$0xf] %vm789, %v854
      %v857 = vmul.f32 %v693, 0.4
      %v858 = vmul.f32 %v782, 0.6
      %v859 = vadd.f32 %v857, %v858
      %v860 = vpack.c.bf16 %v859, %v859
      %s861 = scalar_lea.vmem %s224, 48
      %862 = vst.msk [vmem:[%s861] sm:$0xf] %vm789, %v860
      %v863 = vmul.f32 %v782, 0.93333334
      %v864 = vmul.f32 %v785, 0.06666667
      %v865 = vadd.f32 %v863, %v864
      %v866 = vpack.c.bf16 %v865, %v865
      %s867 = scalar_lea.vmem %s224, 52
      %868 = vst.msk [vmem:[%s867] sm:$0xf] %vm789, %v866
      %v869 = vmul.f32 %v782, 0.46666667
      %v870 = vmul.f32 %v785, 0.53333336
      %v871 = vadd.f32 %v869, %v870
      %v872 = vpack.c.bf16 %v871, %v871
      %s873 = scalar_lea.vmem %s224, 56
      %874 = vst.msk [vmem:[%s873] sm:$0xf] %vm789, %v872
      %v875 = vpack.c.bf16 %v785, %v785
      %s876 = scalar_lea.vmem %s224, 60
      %877 = vst.msk [vmem:[%s876] sm:$0xf] %vm789, %v875
      %p878 = scmp.lt.s32.totalorder %s16, 1
      %s879 = scalar_select %p878, %s16, 1
      %s880 = smul.addr %s879, 16
      %s881 = smul.addr %s880, 4
      %s882 = scalar_lea.vmem %s5, %s881
      // Predicated region
      $region41: #{_lambda_.4} parent=39 // pred_check
        %p883 = pneg %p144
      $region42: #{_lambda_.4} parent=39 // pred_check_branch
        %885 = sbr.rel (%p883) target = $region44
      $region43: #{_lambda_.4} parent=39 // pred_region
        _
      $region44: #{_lambda_.4} parent=39 // pred_fallthru
        _
    $region40: #{_lambda_.4} parent=5 // pred_fallthru
      _
    %p886 = scmp.le.s32.totalorder 2, %s11
    // Predicated region
    $region45: #{_lambda_.4} parent=5 // pred_check
      %p887 = pneg %p886
    $region46: #{_lambda_.4} parent=5 // pred_check_branch
      %889 = sbr.rel (%p887) target = $region48
    $region47: #{_lambda_.4} parent=5 // pred_region
      %s890 = ssub.s32 %s11, 2
      // Predicated region
      $region49: #{_lambda_.4} parent=47 // pred_check
        %p891 = pneg %p150
      $region50: #{_lambda_.4} parent=47 // pred_check_branch
        %893 = sbr.rel (%p891) target = $region52
      $region51: #{_lambda_.4} parent=47 // pred_region
        %p894 = scmp.lt.s32.totalorder %s17, 1
        %s895 = scalar_select %p894, %s17, 1
        %s896 = smul.addr %s895, 16
        %s897 = smul.addr %s896, 4
        %s898 = scalar_lea.vmem %s5, %s897
      $region52: #{_lambda_.4} parent=47 // pred_fallthru
        _
    $region48: #{_lambda_.4} parent=5 // pred_fallthru
      _
  $region6: #{_lambda_.4} parent=0 // loop_footer
    %s15 = sadd.s32 1, %s11
  $region7: #{_lambda_.4} parent=0 // loop_footer_branch
    %10 = sbr.rel target = $region3
  $region8: #{_lambda_.4} parent=0 // loop_exit
    _

// kernel: _lambda_.5
$region0: #{_lambda_.5}
  #allocation0 [shape = 'u32[]', space=smem, size = 0x4, offset = 0x4, fixed_abs, tag = 'smem constant byte address 0x4 - core index']
  #allocation1 [shape = 'u32[144,128]{1,0:T(1,128)}', space=vmem, size = 0x12000, scoped, tag = 'internal scratch']
  %s0 = inlined_call_operand.vmem [shape: bf16[2,72,256], index: 0, kind: input, shape index: {}]
  %s1 = inlined_call_operand.vmem [shape: bf16[3,72], index: 1, kind: input, shape index: {}]
  %s2 = inlined_call_operand.vmem [shape: f32[3,1], index: 2, kind: input, shape index: {}]
  %s3 = inlined_call_operand.vmem [shape: f32[3,1], index: 3, kind: input, shape index: {}]
  %s4 = inlined_call_operand.vmem [shape: f32[2,3,256], index: 4, kind: output, shape index: {}]
  %s5 = sld [smem:[#allocation0]]
  $region49: #{_lambda_.5} parent=0
    _
  %s7 = ssub.s32 1, %s5
  %s8 = scalar_select 0, %s7, %s5
  loop: start=0, step=1, limit=4
  $region2: #{_lambda_.5} parent=0 // loop_pre_header
    _
  $region3: #{_lambda_.5} parent=0 // loop_header
    %s10 = sphi 0, %s14
    %p11 = scmp.ge.s32.totalorder %s10, 4
    %s20 = sphi 0, %s22
    %s23 = sphi 0, %s20
    %s24 = sphi 0, %s23
    %s40 = sphi 0, %s24
    %s44 = sphi 0, %s44
    %s46 = sphi 0, %s44
    %s47 = sphi 0, %s46
    %s61 = sphi 0, %s47
    %s65 = sphi 0, %s65
    %s67 = sphi 0, %s65
    %s68 = sphi 0, %s67
    %s82 = sphi 0, %s68
    %s86 = sphi 0, %s86
    %s88 = sphi 0, %s86
    %s89 = sphi 0, %s88
    %s103 = sphi 0, %s89
    %s109 = sphi 0, %s111
    %s112 = sphi 0, %s109
    %s113 = sphi 0, %s112
    %s129 = sphi 0, %s113
  $region4: #{_lambda_.5} parent=0 // loop_header_branch
    %13 = sbr.rel (%p11) target = $region8
  $region5: #{_lambda_.5} parent=0 // loop_body
    %s15 = ssub.s32 %s10, 1
    %s16 = ssub.s32 %s10, 2
    %s17 = sadd.s32 %s10, 1
    %s18 = ssub.s32 %s10, %s17
    %p19 = scmp.eq.s32.totalorder %s18, 0
    %s21 = sadd.s32 %s20, 1
    %s22 = scalar_select %p19, %s20, %s21
    %p25 = pneg %p19
    %p26 = scmp.eq.s32.totalorder %s10, 1
    %p27 = por %p25, %p26
    %p28 = scmp.ne.s32.totalorder %s20, %s23
    %p29 = scmp.eq.s32.totalorder %s10, 0
    %p30 = por %p28, %p29
    %p31 = scmp.ne.s32.totalorder %s20, %s23
    %p32 = scmp.eq.s32.totalorder %s15, 1
    %p33 = por %p31, %p32
    %p34 = scmp.ne.s32.totalorder %s23, %s24
    %p35 = scmp.eq.s32.totalorder %s15, 0
    %p36 = por %p34, %p35
    %p37 = scmp.ne.s32.totalorder %s23, %s24
    %p38 = scmp.eq.s32.totalorder %s16, 1
    %p39 = por %p37, %p38
    %p41 = scmp.ne.s32.totalorder %s24, %s40
    %p42 = scmp.eq.s32.totalorder %s16, 0
    %p43 = por %p41, %p42
    %s45 = sadd.s32 %s44, 1
    %p48 = scmp.eq.s32.totalorder %s10, 1
    %p49 = scmp.ne.s32.totalorder %s44, %s46
    %p50 = scmp.eq.s32.totalorder %s10, 0
    %p51 = por %p49, %p50
    %p52 = scmp.ne.s32.totalorder %s44, %s46
    %p53 = scmp.eq.s32.totalorder %s15, 1
    %p54 = por %p52, %p53
    %p55 = scmp.ne.s32.totalorder %s46, %s47
    %p56 = scmp.eq.s32.totalorder %s15, 0
    %p57 = por %p55, %p56
    %p58 = scmp.ne.s32.totalorder %s46, %s47
    %p59 = scmp.eq.s32.totalorder %s16, 1
    %p60 = por %p58, %p59
    %p62 = scmp.ne.s32.totalorder %s47, %s61
    %p63 = scmp.eq.s32.totalorder %s16, 0
    %p64 = por %p62, %p63
    %s66 = sadd.s32 %s65, 1
    %p69 = scmp.eq.s32.totalorder %s10, 1
    %p70 = scmp.ne.s32.totalorder %s65, %s67
    %p71 = scmp.eq.s32.totalorder %s10, 0
    %p72 = por %p70, %p71
    %p73 = scmp.ne.s32.totalorder %s65, %s67
    %p74 = scmp.eq.s32.totalorder %s15, 1
    %p75 = por %p73, %p74
    %p76 = scmp.ne.s32.totalorder %s67, %s68
    %p77 = scmp.eq.s32.totalorder %s15, 0
    %p78 = por %p76, %p77
    %p79 = scmp.ne.s32.totalorder %s67, %s68
    %p80 = scmp.eq.s32.totalorder %s16, 1
    %p81 = por %p79, %p80
    %p83 = scmp.ne.s32.totalorder %s68, %s82
    %p84 = scmp.eq.s32.totalorder %s16, 0
    %p85 = por %p83, %p84
    %s87 = sadd.s32 %s86, 1
    %p90 = scmp.eq.s32.totalorder %s10, 1
    %p91 = scmp.ne.s32.totalorder %s86, %s88
    %p92 = scmp.eq.s32.totalorder %s10, 0
    %p93 = por %p91, %p92
    %p94 = scmp.ne.s32.totalorder %s86, %s88
    %p95 = scmp.eq.s32.totalorder %s15, 1
    %p96 = por %p94, %p95
    %p97 = scmp.ne.s32.totalorder %s88, %s89
    %p98 = scmp.eq.s32.totalorder %s15, 0
    %p99 = por %p97, %p98
    %p100 = scmp.ne.s32.totalorder %s88, %s89
    %p101 = scmp.eq.s32.totalorder %s16, 1
    %p102 = por %p100, %p101
    %p104 = scmp.ne.s32.totalorder %s89, %s103
    %p105 = scmp.eq.s32.totalorder %s16, 0
    %p106 = por %p104, %p105
    %s107 = ssub.s32 %s10, %s17
    %p108 = scmp.eq.s32.totalorder %s107, 0
    %s110 = sadd.s32 %s109, 1
    %s111 = scalar_select %p108, %s109, %s110
    %p114 = pneg %p108
    %p115 = scmp.eq.s32.totalorder %s10, 1
    %p116 = por %p114, %p115
    %p117 = scmp.ne.s32.totalorder %s109, %s112
    %p118 = scmp.eq.s32.totalorder %s10, 0
    %p119 = por %p117, %p118
    %p120 = scmp.ne.s32.totalorder %s109, %s112
    %p121 = scmp.eq.s32.totalorder %s15, 1
    %p122 = por %p120, %p121
    %p123 = scmp.ne.s32.totalorder %s112, %s113
    %p124 = scmp.eq.s32.totalorder %s15, 0
    %p125 = por %p123, %p124
    %p126 = scmp.ne.s32.totalorder %s112, %s113
    %p127 = scmp.eq.s32.totalorder %s16, 1
    %p128 = por %p126, %p127
    %p130 = scmp.ne.s32.totalorder %s113, %s129
    %p131 = scmp.eq.s32.totalorder %s16, 0
    %p132 = por %p130, %p131
    %p133 = scmp.le.s32.totalorder 1, %s10
    %p134 = scmp.lt.s32.totalorder %s10, 3
    %p135 = pnand %p133, %p134
    %p136 = pneg %p135
    // Predicated region
    $region9: #{_lambda_.5} parent=5 // pred_check
      _
    $region10: #{_lambda_.5} parent=5 // pred_check_branch
      %138 = sbr.rel (%p135) target = $region12
    $region11: #{_lambda_.5} parent=5 // pred_region
      %s139 = ssub.s32 %s10, 1
      // Predicated region
      $region13: #{_lambda_.5} parent=11 // pred_check
        %p140 = pneg %p57
      $region14: #{_lambda_.5} parent=11 // pred_check_branch
        %142 = sbr.rel (%p140) target = $region16
      $region15: #{_lambda_.5} parent=11 // pred_region
        _
      $region16: #{_lambda_.5} parent=11 // pred_fallthru
        _
      // Predicated region
      $region17: #{_lambda_.5} parent=11 // pred_check
        %p143 = pneg %p78
      $region18: #{_lambda_.5} parent=11 // pred_check_branch
        %145 = sbr.rel (%p143) target = $region20
      $region19: #{_lambda_.5} parent=11 // pred_region
        _
      $region20: #{_lambda_.5} parent=11 // pred_fallthru
        _
      // Predicated region
      $region21: #{_lambda_.5} parent=11 // pred_check
        %p146 = pneg %p99
      $region22: #{_lambda_.5} parent=11 // pred_check_branch
        %148 = sbr.rel (%p146) target = $region24
      $region23: #{_lambda_.5} parent=11 // pred_region
        _
      $region24: #{_lambda_.5} parent=11 // pred_fallthru
        _
    $region12: #{_lambda_.5} parent=5 // pred_fallthru
      _
    %p149 = scmp.lt.s32.totalorder %s10, 2
    // Predicated region
    $region25: #{_lambda_.5} parent=5 // pred_check
      %p150 = pneg %p149
    $region26: #{_lambda_.5} parent=5 // pred_check_branch
      %152 = sbr.rel (%p150) target = $region28
    $region27: #{_lambda_.5} parent=5 // pred_region
      // Predicated region
      $region29: #{_lambda_.5} parent=27 // pred_check
        %p153 = pneg %p30
      $region30: #{_lambda_.5} parent=27 // pred_check_branch
        %155 = sbr.rel (%p153) target = $region32
      $region31: #{_lambda_.5} parent=27 // pred_region
        %p156 = scmp.lt.s32.totalorder %s10, 1
        %s157 = scalar_select %p156, %s10, 1
        %s158 = smul.addr %s157, 18
        %s159 = smul.addr %s158, 4
        %s160 = scalar_lea.vmem %s0, %s159
      $region32: #{_lambda_.5} parent=27 // pred_fallthru
        _
    $region28: #{_lambda_.5} parent=5 // pred_fallthru
      _
    %p161 = scmp.le.s32.totalorder 1, %s10
    %p162 = scmp.lt.s32.totalorder %s10, 3
    %p163 = pnand %p161, %p162
    %p164 = pneg %p163
    // Predicated region
    $region33: #{_lambda_.5} parent=5 // pred_check
      _
    $region34: #{_lambda_.5} parent=5 // pred_check_branch
      %166 = sbr.rel (%p163) target = $region36
    $region35: #{_lambda_.5} parent=5 // pred_region
      %s167 = ssub.s32 %s10, 1
      %p168 = scmp.lt.s32.totalorder %s15, 1
      %s169 = scalar_select %p168, %s15, 1
      %s170 = smul.addr %s169, 18
      %s171 = smul.addr %s170, 4
      %s172 = scalar_lea.vmem %s0, %s171
      %p173 = pneg %p36
      %p174 = pneg %p33
      %p175 = pneg %p57
      %p176 = pneg %p54
      %p177 = pneg %p78
      %p178 = pneg %p75
      %p179 = pneg %p99
      %p180 = pneg %p96
      %p181 = pneg %p125
      %p182 = pneg %p122
      %p183 = scmp.lt.s32.totalorder %s15, 1
      %s184 = scalar_select %p183, %s15, 1
      %s185 = smul.addr %s184, 2
      %s186 = smul.addr %s185, 4
      %s187 = scalar_lea.vmem %s4, %s186
      %p188 = scmp.lt.s32.totalorder %s15, 1
      %s189 = scalar_select %p188, %s15, 1
      %s190 = smul.addr %s189, 18
      %s191 = smul.addr %s190, 4
      %s192 = scalar_lea.vmem %s0, %s191
      %p193 = scmp.lt.s32.totalorder %s15, 1
      %s194 = scalar_select %p193, %s15, 1
      %s195 = smul.addr %s194, 2
      %s196 = smul.addr %s195, 4
      %s197 = scalar_lea.vmem %s4, %s196
      %v199 = vld [vmem:[%s1] sm:$0x3]
      %v200 = vld [vmem:[%s192] sm:$0xff]
      %v201 = vld [vmem:[%s192 + $0x8] sm:$0xff]
      %v202 = vld [vmem:[%s192 + $0x10] sm:$0xff]
      %v203 = vld [vmem:[%s192 + $0x18] sm:$0xff]
      %v204 = vld [vmem:[%s192 + $0x20] sm:$0xff]
      %v205 = vld [vmem:[%s192 + $0x28] sm:$0xff]
      %v206 = vld [vmem:[%s192 + $0x30] sm:$0xff]
      %v207 = vld [vmem:[%s192 + $0x38] sm:$0xff]
      %v208 = vld [vmem:[%s192 + $0x40] sm:$0xff]
      %v218 = vunpack.c.l.b16 %v200
      %v219 = vunpack.c.h.b16 %v200
      %v220 = vunpack.c.l.b16 %v201
      %v221 = vunpack.c.h.b16 %v201
      %v222 = vunpack.c.l.b16 %v202
      %v223 = vunpack.c.h.b16 %v202
      %v224 = vunpack.c.l.b16 %v203
      %v225 = vunpack.c.h.b16 %v203
      %v226 = vunpack.c.l.b16 %v204
      %v227 = vunpack.c.h.b16 %v204
      %v228 = vunpack.c.l.b16 %v205
      %v229 = vunpack.c.h.b16 %v205
      %v230 = vunpack.c.l.b16 %v206
      %v231 = vunpack.c.h.b16 %v206
      %v232 = vunpack.c.l.b16 %v207
      %v233 = vunpack.c.h.b16 %v207
      %v234 = vunpack.c.l.b16 %v208
      %v235 = vunpack.c.h.b16 %v208
      %v236 = vpack.c.b16 %v220, %v218
      %v237 = vpack.c.b16 %v221, %v219
      %v238 = vpack.c.b16 %v224, %v222
      %v239 = vpack.c.b16 %v225, %v223
      %v240 = vpack.c.b16 %v228, %v226
      %v241 = vpack.c.b16 %v229, %v227
      %v242 = vpack.c.b16 %v232, %v230
      %v243 = vpack.c.b16 %v233, %v231
      %v244 = vpack.c.b16 %v234, %v234
      %v245 = vpack.c.b16 %v235, %v235
      %vm254 = vcmask 588800
      %v256 = vsel %vm254, %v199, 0
      %vm258 = vcmask 1043456
      %v260 = vsel %vm258, %v244, 0
      %v263 = vsel %vm258, %v245, 0
      %265 = vmatprep.subr.bf16.mxu0 %v237
      %266 = vmatpush1.bf16.msra.mxu0 %v236
      %267 = vmatprep.subr.bf16.mxu0 %v239
      %268 = vmatpush1.bf16.msra.mxu0 %v238
      %269 = vmatprep.subr.bf16.mxu0 %v241
      %270 = vmatpush1.bf16.msra.mxu0 %v240
      %271 = vmatprep.subr.bf16.mxu0 %v243
      %272 = vmatpush1.bf16.msra.mxu0 %v242
      %273 = vmatprep.subr.bf16.mxu0 %v263
      %274 = vmatpush1.bf16.msra.mxu0 %v260
      %275 = vmatprep.subr.bf16.mxu0 0
      %276 = vmatpush1.bf16.msra.mxu0 0
      %277 = vmatprep.subr.bf16.mxu0 0
      %278 = vmatpush1.bf16.msra.mxu0 0
      %279 = vmatprep.subr.bf16.mxu0 0
      %280 = vmatpush1.bf16.msra.mxu0 0
      %281 = vmatprep.subr.bf16.mxu0 0
      %282 = vmatpush1.bf16.msra.mxu0 0
      %283 = vmatprep.subr.bf16.mxu0 0
      %284 = vmatpush1.bf16.msra.mxu0 0
      %285 = vmatprep.subr.bf16.mxu0 0
      %286 = vmatpush1.bf16.msra.mxu0 0
      %287 = vmatprep.subr.bf16.mxu0 0
      %288 = vmatpush1.bf16.msra.mxu0 0
      %289 = vmatprep.subr.bf16.mxu0 0
      %290 = vmatpush1.bf16.msra.mxu0 0
      %291 = vmatprep.subr.bf16.mxu0 0
      %292 = vmatpush1.bf16.msra.mxu0 0
      %293 = vmatprep.subr.bf16.mxu0 0
      %294 = vmatpush1.bf16.msra.mxu0 0
      %295 = vmatprep.subr.bf16.mxu0 0
      %296 = vmatpush1.bf16.msra.mxu0 0
      %297 = vmatprep.mubr.bf16.mxu0 0
      %298 = vmatmul.mubr.bf16.gmra.mrb[0].mxu0 %v256
      %v299 = vpop.f32.mrb[0].mxu0
      %v300 = vadd.f32 0.0, %v299
      %v301 = vpop.f32.mrb[0].mxu0
      %v302 = vadd.f32 0.0, %v301
      %v303 = vpop.f32.mrb[0].mxu0
      %v304 = vpop.f32.mrb[0].mxu0
      %305 = vdwg.mxu0
      %vm306 = vcmask 1042432
      %v307 = vsel %vm306, %v300, 0.0
      %v308 = vsel %vm306, %v302, 0.0
      %v309 = vadd.f32 %v307, %v308
      %310 = vadd.xlane.f32.xlu0 %v309
      %v311 = vpop.xlane.xlu0 %310
      %v312 = vmul.f32 %v300, %v300
      %v313 = vmul.f32 %v302, %v302
      %v314 = vsel %vm306, %v312, 0.0
      %v315 = vsel %vm306, %v313, 0.0
      %v316 = vadd.f32 %v314, %v315
      %317 = vadd.xlane.f32.xlu0 %v316
      %v318 = vpop.xlane.xlu0 %317
      %v319 = vmul.f32 %v311, 0.00390625
      %v320 = vmul.f32 %v318, 0.00390625
      %v321 = vmul.f32 %v319, %v319
      %v322 = vsub.f32 %v320, %v321
      %v323 = vmax.f32 %v322, 0.0
      %v324 = vsub.f32 %v300, %v319
      %v325 = vsub.f32 %v302, %v319
      %v326 = vadd.f32 %v323, 1e-05
      %v327 = vrsqrt.pop %v326
      %v328 = vld [vmem:[%s2] sm:$0x7]
      %v329 = vmul.f32 %v327, %v328
      %331 = vset.pattern.permute.xlu0 0
      %332 = vperm.xlu0 %331, %v329
      %v333 = vpop.permute.xlu0 %332
      %v335 = vmul.f32 %v324, %v333
      %v336 = vmul.f32 %v325, %v333
      %v337 = vld [vmem:[%s3] sm:$0x7]
      %339 = vset.pattern.permute.xlu0 0
      %340 = vperm.xlu0 %339, %v337
      %v341 = vpop.permute.xlu0 %340
      %v343 = vadd.f32 %v335, %v341
      %v344 = vadd.f32 %v336, %v341
      %v345 = vtanh.pop %v343
      %v346 = vtanh.pop %v344
      %v349 = vcombine.low %v345, %v346
      %351 = vst [vmem:[%s197] sm:$0x77] %v349
      %p352 = scmp.lt.s32.totalorder %s15, 1
      %s353 = scalar_select %p352, %s15, 1
      %s354 = smul.addr %s353, 2
      %s355 = smul.addr %s354, 4
      %s356 = scalar_lea.vmem %s4, %s355
      // Predicated region
      $region37: #{_lambda_.5} parent=35 // pred_check
        %p357 = pneg %p122
      $region38: #{_lambda_.5} parent=35 // pred_check_branch
        %359 = sbr.rel (%p357) target = $region40
      $region39: #{_lambda_.5} parent=35 // pred_region
        _
      $region40: #{_lambda_.5} parent=35 // pred_fallthru
        _
    $region36: #{_lambda_.5} parent=5 // pred_fallthru
      _
    %p360 = scmp.le.s32.totalorder 2, %s10
    // Predicated region
    $region41: #{_lambda_.5} parent=5 // pred_check
      %p361 = pneg %p360
    $region42: #{_lambda_.5} parent=5 // pred_check_branch
      %363 = sbr.rel (%p361) target = $region44
    $region43: #{_lambda_.5} parent=5 // pred_region
      %s364 = ssub.s32 %s10, 2
      // Predicated region
      $region45: #{_lambda_.5} parent=43 // pred_check
        %p365 = pneg %p128
      $region46: #{_lambda_.5} parent=43 // pred_check_branch
        %367 = sbr.rel (%p365) target = $region48
      $region47: #{_lambda_.5} parent=43 // pred_region
        %p368 = scmp.lt.s32.totalorder %s16, 1
        %s369 = scalar_select %p368, %s16, 1
        %s370 = smul.addr %s369, 2
        %s371 = smul.addr %s370, 4
        %s372 = scalar_lea.vmem %s4, %s371
      $region48: #{_lambda_.5} parent=43 // pred_fallthru
        _
    $region44: #{_lambda_.5} parent=5 // pred_fallthru
      _
  $region6: #{_lambda_.5} parent=0 // loop_footer
    %s14 = sadd.s32 1, %s10
  $region7: #{_lambda_.5} parent=0 // loop_footer_branch
    %9 = sbr.rel target = $region3
  $region8: #{_lambda_.5} parent=0 // loop_exit
    _

</llo_original>
